<compile_context>
chip_gen: v7x
topology: tpu7x:2x2x1
jax: 0.10.0
libtpu: 0.0.40
codegen_flags: <defaults>
</compile_context>

<pallas_src>
import functools

import jax
import jax.numpy as jnp
from jax.experimental import pallas as pl
from jax.experimental.pallas import tpu as pltpu


def lurie_kernel(x0_ref, act_ref, bt_ref, bx_ref, by_ref, out_ref, x_scr, *,
                 t_tile: int, N: int, n_chains: int):
    # x0_ref : (b_tile, N)        lane-padded initial state for this batch tile
    # act_ref: (N, 2N)            [step*A.T | C.T], zero padded
    # bt_ref : (N, N)             step*B.T, zero padded
    # bx_ref : (1, N)  step*bx ;  by_ref: (1, N)  by
    # out_ref: (b_tile, t_tile*N) flat, lane-dense time chunk of the trajectory
    # x_scr  : (b_tile, N)        VMEM scratch carrying the state across the
    #                             "arbitrary" time-chunk grid axis.

    # First time-chunk of each batch tile: seed the carried state from X0.
    @pl.when(pl.program_id(1) == 0)
    def _():
        x_scr[...] = x0_ref[...]

    b_tile = x_scr.shape[0]
    rows = b_tile // n_chains
    w_dt = act_ref.dtype

    # Hoist bias broadcasts out of the unrolled time loop (per-chain shape).
    bx_b = jnp.broadcast_to(bx_ref[...], (rows, N))
    by_b = jnp.broadcast_to(by_ref[...], (rows, N))

    def advance(xc):
        # One Euler step for one independent batch sub-chain.
        z = jnp.dot(xc.astype(w_dt), act_ref[...],
                    preferred_element_type=jnp.float32)        # (rows, 2N)
        y = jnp.tanh(z[:, N:] + by_b)                          # EUP
        return (xc + z[:, :N]
                + jnp.dot(y.astype(w_dt), bt_ref[...],
                          preferred_element_type=jnp.float32)
                + bx_b)

    x_all = x_scr[...]
    chains = [x_all[c * rows:(c + 1) * rows, :] for c in range(n_chains)]

    # Static unroll: store X[g*t_tile + t] for all chains, then advance all
    # chains.  The chains are independent, so the scheduler interleaves their
    # MXU pushes / tanh / VPU adds to hide the per-chain serial latency.
    for t in range(t_tile):
        for c in range(n_chains):
            out_ref[c * rows:(c + 1) * rows, t * N:(t + 1) * N] = chains[c]
        if t + 1 < t_tile:
            chains = [advance(xc) for xc in chains]

    # Seed the next time chunk.  Skipped on the last chunk of the batch tile:
    # saves 2 MXU pushes + one tanh per chain (the result would be discarded).
    @pl.when(pl.program_id(1) + 1 < pl.num_programs(1))
    def _():
        for c in range(n_chains):
            x_scr[c * rows:(c + 1) * rows, :] = advance(chains[c])


def _pick_b_tile(bs: int) -> int:
    """Largest multiple-of-8 divisor of bs that leaves >= 2 batch-grid entries
    (so the 'parallel' axis can shard across v7x's 2 TCs); else whole batch."""
    best = None
    for bt in range(8, bs // 2 + 1, 8):
        if bs % bt == 0:
            best = bt
    return best if best is not None else bs


def _pick_chains(b_tile: int) -> int:
    """Independent batch sub-chains interleaved per time step."""
    for c in (4, 2):
        if b_tile % c == 0 and b_tile // c >= 8:
            return c
    if b_tile % 2 == 0 and b_tile >= 4:
        return 2
    return 1


def _pick_t_tile(tmax: int, N: int, b_tile: int, budget_bytes: int,
                 max_unroll: int) -> int:
    """Largest divisor of tmax (capped by the static-unroll cap) whose
    single-copy output block fits budget_bytes."""
    best = 1
    for d in range(1, min(tmax, max_unroll) + 1):
        if tmax % d == 0 and d * N * b_tile * 4 <= budget_bytes:
            best = d
    return best


def _const_spec(shape, single_buffer: bool) -> pl.BlockSpec:
    """BlockSpec for an operand fetched once (constant index map).  For large
    operands request single buffering so the pipeline does not reserve 2x
    VMEM for a tensor that never changes."""
    idx = lambda b, t: (0, 0)
    if single_buffer and hasattr(pl, "Buffered"):
        try:
            return pl.BlockSpec(shape, idx, pipeline_mode=pl.Buffered(1))
        except TypeError:  # older jax without pipeline_mode kwarg
            pass
    return pl.BlockSpec(shape, idx)


def lurie_net_forward(x0, A, B, C, bx, by, *, step: float, tmax: int,
                      t_tile: int | None = None, b_tile: int | None = None,
                      n_chains: int | None = None,
                      matmul_dtype=jnp.float32,
                      out_block_budget_bytes: int = 2 << 20,
                      max_unroll: int = 16):
    """x0: (bs, n). A/B/C: (n, n). bx/by: (n, 1) or (n,) (nn.Linear(1, n)
    weight layout). Returns the trajectory (bs, tmax, n) in float32."""
    bs, n = x0.shape
    N = ((n + 127) // 128) * 128          # lane-padded state width

    if b_tile is None:
        b_tile = _pick_b_tile(bs)
    assert bs % b_tile == 0
    if n_chains is None:
        n_chains = _pick_chains(b_tile)
    assert b_tile % n_chains == 0
    if t_tile is None:
        t_tile = _pick_t_tile(tmax, N, b_tile, out_block_budget_bytes,
                              max_unroll)
    assert tmax % t_tile == 0

    f32 = jnp.float32
    x0_p = jnp.zeros((bs, N), f32).at[:, :n].set(x0.astype(f32))

    # Fold the integration step into the constants ONCE, outside the
    # recurrence (NOT into C.T / by: they feed tanh).
    A_s = step * jnp.asarray(A, f32).T
    C_t = jnp.asarray(C, f32).T
    B_s = step * jnp.asarray(B, f32).T
    ACt = (jnp.zeros((N, 2 * N), f32)
           .at[:n, :n].set(A_s)
           .at[:n, N:N + n].set(C_t)).astype(matmul_dtype)
    Bt = jnp.zeros((N, N), f32).at[:n, :n].set(B_s).astype(matmul_dtype)

    # nn.Linear(1, n).weight is (n, 1); kernel wants a padded (1, N) lane row.
    bx_row = jnp.zeros((1, N), f32).at[0, :n].set(
        step * jnp.asarray(bx, f32).reshape(-1))
    by_row = jnp.zeros((1, N), f32).at[0, :n].set(
        jnp.asarray(by, f32).reshape(-1))

    w_bytes = (2 * N * N + N * N) * jnp.dtype(matmul_dtype).itemsize
    single_buf = w_bytes > (2 << 20)      # only bother for genuinely big weights

    out_block_bytes = b_tile * t_tile * N * 4
    vmem_limit = int(1.25 * (2 * out_block_bytes            # out (dbl buffered)
                             + 2 * b_tile * N * 4           # x0 (dbl buffered)
                             + (1 if single_buf else 2) * w_bytes
                             + b_tile * N * 4               # x_scr
                             + 4 * N * 4)) + (1 << 20)
    vmem_limit = min(max(vmem_limit, 4 << 20), 64 << 20)

    grid = (bs // b_tile, tmax // t_tile)
    kern = functools.partial(lurie_kernel, t_tile=t_tile, N=N,
                             n_chains=n_chains)

    traj = pl.pallas_call(
        kern,
        out_shape=jax.ShapeDtypeStruct((bs, tmax * N), f32),
        grid_spec=pltpu.PrefetchScalarGridSpec(
            num_scalar_prefetch=0,
            grid=grid,
            in_specs=[
                pl.BlockSpec((b_tile, N), lambda b, t: (b, 0)),   # x0
                _const_spec((N, 2 * N), single_buf),              # [sA.T|C.T]
                _const_spec((N, N), single_buf),                  # step*B.T
                _const_spec((1, N), single_buf),                  # step*bx
                _const_spec((1, N), single_buf),                  # by
            ],
            out_specs=pl.BlockSpec((b_tile, t_tile * N),
                                   lambda b, t: (b, t)),
            scratch_shapes=[pltpu.VMEM((b_tile, N), f32)],
        ),
        compiler_params=pltpu.CompilerParams(
            dimension_semantics=("parallel", "arbitrary"),
            vmem_limit_bytes=vmem_limit),
    )(x0_p, ACt, Bt, bx_row, by_row)

    traj = traj.reshape(bs, tmax, N)      # free metadata reshape
    return traj if N == n else traj[:, :, :n]


def reference_forward(x0, A, B, C, bx, by, *, step, tmax):
    """Pure-JAX reference mirroring the PyTorch loop (column layout)."""
    bs, n = x0.shape
    f32 = jnp.float32
    A = jnp.asarray(A, f32); B = jnp.asarray(B, f32); C = jnp.asarray(C, f32)
    Xi = x0.T.astype(f32)                                    # (n, bs)
    bx_col = jnp.tile(jnp.reshape(jnp.asarray(bx, f32), (n, 1)), (1, bs))
    by_col = jnp.tile(jnp.reshape(jnp.asarray(by, f32), (n, 1)), (1, bs))
    xs = [Xi]
    for _ in range(tmax - 1):
        Yi = C @ Xi + by_col
        Xi = Xi + step * (A @ Xi + B @ jnp.tanh(Yi) + bx_col)
        xs.append(Xi)
    X = jnp.stack(xs, axis=0)                                # (tmax, n, bs)
    return jnp.transpose(X, (2, 0, 1))                       # (bs, tmax, n)


if __name__ == "__main__":
    # Module hyper-parameters (small, consistent with the forward pass).
    n = 32       # state dimension
    tmax = 8     # number of time steps
    step = 0.1   # integration step
    bs = 16      # batch size (>=16 -> 2 batch-grid entries for v7x megacore)

    key = jax.random.PRNGKey(0)
    k_a, k_b, k_c, k_bx, k_by, k_x0 = jax.random.split(key, 6)

    # Parameter init mirroring nn.init in __init__:
    #   A ~ N(-1.0, 0.1), B ~ N(0, 0.1), C ~ N(0, 0.1).
    # Biases are nonzero here (unlike the zero init) so the (n,1)
    # nn.Linear(1, n)-weight handling in the wrapper is also validated.
    A = (-1.0 + 0.1 * jax.random.normal(k_a, (n, n))).astype(jnp.float32)
    B = (0.1 * jax.random.normal(k_b, (n, n))).astype(jnp.float32)
    C = (0.1 * jax.random.normal(k_c, (n, n))).astype(jnp.float32)
    bx_w = (0.05 * jax.random.normal(k_bx, (n, 1))).astype(jnp.float32)
    by_w = (0.05 * jax.random.normal(k_by, (n, 1))).astype(jnp.float32)
    X0 = jax.random.normal(k_x0, (bs, n)).astype(jnp.float32)

    # t_tile=4 -> two time chunks, exercising the carried-state VMEM scratch
    # across the "arbitrary" grid axis; auto b_tile=8 -> 2 batch-grid entries;
    # auto n_chains=2 -> interleaved independent sub-chains per step.
    out = lurie_net_forward(X0, A, B, C, bx_w, by_w,
                            step=step, tmax=tmax, t_tile=4)
    out = jax.block_until_ready(out)

    # Sanity check against the pure-JAX reference.
    ref = reference_forward(X0, A, B, C, bx_w, by_w, step=step, tmax=tmax)
    assert out.shape == (bs, tmax, n)
    err = float(jnp.max(jnp.abs(out - ref)))
    assert jnp.allclose(out, ref, atol=1e-3, rtol=1e-4), err

    print("KERNEL_OK")
</pallas_src>

<mosaic_0001>
module attributes {stable_mosaic.version = 11 : i64} {
  func.func @lurie_kernel(%arg0: i32, %arg1: i32, %arg2: memref<8x128xf32, #tpu.memory_space<vmem>>, %arg3: memref<128x256xf32, #tpu.memory_space<vmem>>, %arg4: memref<128x128xf32, #tpu.memory_space<vmem>>, %arg5: memref<1x128xf32, #tpu.memory_space<vmem>>, %arg6: memref<1x128xf32, #tpu.memory_space<vmem>>, %arg7: memref<8x512xf32, #tpu.memory_space<vmem>>, %arg8: memref<8x128xf32, #tpu.memory_space<vmem>>) attributes {dimension_semantics = [#tpu.dimension_semantics<parallel>, #tpu.dimension_semantics<arbitrary>], iteration_bounds = array<i64: 2, 2>, scalar_prefetch = 0 : i64, scratch_operands = 1 : i64, tpu.core_type = #tpu.core_type<tc>, window_params = [{transform_indices = @transform_0, window_bounds = array<i64: 8, 128>}, {pipeline_mode = #tpu.pipeline_mode<synchronous>, transform_indices = @transform_1, window_bounds = array<i64: 128, 256>}, {pipeline_mode = #tpu.pipeline_mode<synchronous>, transform_indices = @transform_2, window_bounds = array<i64: 128, 128>}, {pipeline_mode = #tpu.pipeline_mode<synchronous>, transform_indices = @transform_3, window_bounds = array<i64: 1, 128>}, {pipeline_mode = #tpu.pipeline_mode<synchronous>, transform_indices = @transform_4, window_bounds = array<i64: 1, 128>}, {transform_indices = @transform_5, window_bounds = array<i64: 8, 512>}]} {
    %c0_i32 = arith.constant 0 : i32
    %0 = arith.cmpi eq, %arg1, %c0_i32 : i32
    %1 = arith.extui %0 : i1 to i32
    %c0_i32_0 = arith.constant 0 : i32
    %2 = arith.cmpi ne, %1, %c0_i32_0 : i32
    scf.if %2 {
      %c0_54 = arith.constant 0 : index
      %c0_55 = arith.constant 0 : index
      %90 = vector.load %arg2[%c0_54, %c0_55] : memref<8x128xf32, #tpu.memory_space<vmem>>, vector<8x128xf32>
      %c0_56 = arith.constant 0 : index
      %c0_57 = arith.constant 0 : index
      %91 = vector.load %arg8[%c0_56, %c0_57] : memref<8x128xf32, #tpu.memory_space<vmem>>, vector<8x128xf32>
      tpu.vector_store %arg8[%c0_56, %c0_57], %90 {strides = array<i32>} : memref<8x128xf32, #tpu.memory_space<vmem>>, vector<8x128xf32>,
    } else {
    }
    %c0 = arith.constant 0 : index
    %c0_1 = arith.constant 0 : index
    %3 = vector.load %arg5[%c0, %c0_1] : memref<1x128xf32, #tpu.memory_space<vmem>>, vector<1x128xf32>
    %4 = vector.shape_cast %3 : vector<1x128xf32> to vector<1x128xf32>
    %5 = vector.broadcast %4 : vector<1x128xf32> to vector<4x128xf32>
    %c0_2 = arith.constant 0 : index
    %c0_3 = arith.constant 0 : index
    %6 = vector.load %arg6[%c0_2, %c0_3] : memref<1x128xf32, #tpu.memory_space<vmem>>, vector<1x128xf32>
    %7 = vector.shape_cast %6 : vector<1x128xf32> to vector<1x128xf32>
    %8 = vector.broadcast %7 : vector<1x128xf32> to vector<4x128xf32>
    %c0_4 = arith.constant 0 : index
    %c0_5 = arith.constant 0 : index
    %9 = vector.load %arg8[%c0_4, %c0_5] : memref<8x128xf32, #tpu.memory_space<vmem>>, vector<8x128xf32>
    %10 = vector.extract_strided_slice %9 {offsets = [0, 0], sizes = [4, 128], strides = [1, 1]} : vector<8x128xf32> to vector<4x128xf32>
    %11 = vector.extract_strided_slice %9 {offsets = [4, 0], sizes = [4, 128], strides = [1, 1]} : vector<8x128xf32> to vector<4x128xf32>
    %c0_6 = arith.constant 0 : index
    %c0_7 = arith.constant 0 : index
    %12 = vector.load %arg7[%c0_6, %c0_7] : memref<8x512xf32, #tpu.memory_space<vmem>>, vector<4x128xf32>
    tpu.vector_store %arg7[%c0_6, %c0_7], %10 {strides = array<i32>} : memref<8x512xf32, #tpu.memory_space<vmem>>, vector<4x128xf32>,
    %c4 = arith.constant 4 : index
    %c0_8 = arith.constant 0 : index
    %13 = vector.load %arg7[%c4, %c0_8] : memref<8x512xf32, #tpu.memory_space<vmem>>, vector<4x128xf32>
    tpu.vector_store %arg7[%c4, %c0_8], %11 {strides = array<i32>} : memref<8x512xf32, #tpu.memory_space<vmem>>, vector<4x128xf32>,
    %c0_9 = arith.constant 0 : index
    %c0_10 = arith.constant 0 : index
    %14 = vector.load %arg3[%c0_9, %c0_10] : memref<128x256xf32, #tpu.memory_space<vmem>>, vector<128x256xf32>
    %cst = arith.constant dense<0.000000e+00> : vector<4x256xf32>
    %15 = tpu.matmul %10, %14, %cst {dimension_numbers = #tpu.dot_dimension_numbers<[1], [0], [0], [1], [0, 0, 1, 1], [], []>} : vector<4x128xf32>, vector<128x256xf32>, vector<4x256xf32> -> vector<4x256xf32>
    %16 = vector.extract_strided_slice %15 {offsets = [0, 128], sizes = [4, 128], strides = [1, 1]} : vector<4x256xf32> to vector<4x128xf32>
    %17 = arith.addf %16, %8 : vector<4x128xf32>
    %18 = math.tanh %17 : vector<4x128xf32>
    %19 = vector.extract_strided_slice %15 {offsets = [0, 0], sizes = [4, 128], strides = [1, 1]} : vector<4x256xf32> to vector<4x128xf32>
    %20 = arith.addf %10, %19 : vector<4x128xf32>
    %c0_11 = arith.constant 0 : index
    %c0_12 = arith.constant 0 : index
    %21 = vector.load %arg4[%c0_11, %c0_12] : memref<128x128xf32, #tpu.memory_space<vmem>>, vector<128x128xf32>
    %cst_13 = arith.constant dense<0.000000e+00> : vector<4x128xf32>
    %22 = tpu.matmul %18, %21, %cst_13 {dimension_numbers = #tpu.dot_dimension_numbers<[1], [0], [0], [1], [0, 0, 1, 1], [], []>} : vector<4x128xf32>, vector<128x128xf32>, vector<4x128xf32> -> vector<4x128xf32>
    %23 = arith.addf %20, %22 : vector<4x128xf32>
    %24 = arith.addf %23, %5 : vector<4x128xf32>
    %c0_14 = arith.constant 0 : index
    %c0_15 = arith.constant 0 : index
    %25 = vector.load %arg3[%c0_14, %c0_15] : memref<128x256xf32, #tpu.memory_space<vmem>>, vector<128x256xf32>
    %cst_16 = arith.constant dense<0.000000e+00> : vector<4x256xf32>
    %26 = tpu.matmul %11, %25, %cst_16 {dimension_numbers = #tpu.dot_dimension_numbers<[1], [0], [0], [1], [0, 0, 1, 1], [], []>} : vector<4x128xf32>, vector<128x256xf32>, vector<4x256xf32> -> vector<4x256xf32>
    %27 = vector.extract_strided_slice %26 {offsets = [0, 128], sizes = [4, 128], strides = [1, 1]} : vector<4x256xf32> to vector<4x128xf32>
    %28 = arith.addf %27, %8 : vector<4x128xf32>
    %29 = math.tanh %28 : vector<4x128xf32>
    %30 = vector.extract_strided_slice %26 {offsets = [0, 0], sizes = [4, 128], strides = [1, 1]} : vector<4x256xf32> to vector<4x128xf32>
    %31 = arith.addf %11, %30 : vector<4x128xf32>
    %c0_17 = arith.constant 0 : index
    %c0_18 = arith.constant 0 : index
    %32 = vector.load %arg4[%c0_17, %c0_18] : memref<128x128xf32, #tpu.memory_space<vmem>>, vector<128x128xf32>
    %cst_19 = arith.constant dense<0.000000e+00> : vector<4x128xf32>
    %33 = tpu.matmul %29, %32, %cst_19 {dimension_numbers = #tpu.dot_dimension_numbers<[1], [0], [0], [1], [0, 0, 1, 1], [], []>} : vector<4x128xf32>, vector<128x128xf32>, vector<4x128xf32> -> vector<4x128xf32>
    %34 = arith.addf %31, %33 : vector<4x128xf32>
    %35 = arith.addf %34, %5 : vector<4x128xf32>
    %c0_20 = arith.constant 0 : index
    %c128 = arith.constant 128 : index
    %36 = vector.load %arg7[%c0_20, %c128] : memref<8x512xf32, #tpu.memory_space<vmem>>, vector<4x128xf32>
    tpu.vector_store %arg7[%c0_20, %c128], %24 {strides = array<i32>} : memref<8x512xf32, #tpu.memory_space<vmem>>, vector<4x128xf32>,
    %c4_21 = arith.constant 4 : index
    %c128_22 = arith.constant 128 : index
    %37 = vector.load %arg7[%c4_21, %c128_22] : memref<8x512xf32, #tpu.memory_space<vmem>>, vector<4x128xf32>
    tpu.vector_store %arg7[%c4_21, %c128_22], %35 {strides = array<i32>} : memref<8x512xf32, #tpu.memory_space<vmem>>, vector<4x128xf32>,
    %c0_23 = arith.constant 0 : index
    %c0_24 = arith.constant 0 : index
    %38 = vector.load %arg3[%c0_23, %c0_24] : memref<128x256xf32, #tpu.memory_space<vmem>>, vector<128x256xf32>
    %cst_25 = arith.constant dense<0.000000e+00> : vector<4x256xf32>
    %39 = tpu.matmul %24, %38, %cst_25 {dimension_numbers = #tpu.dot_dimension_numbers<[1], [0], [0], [1], [0, 0, 1, 1], [], []>} : vector<4x128xf32>, vector<128x256xf32>, vector<4x256xf32> -> vector<4x256xf32>
    %40 = vector.extract_strided_slice %39 {offsets = [0, 128], sizes = [4, 128], strides = [1, 1]} : vector<4x256xf32> to vector<4x128xf32>
    %41 = arith.addf %40, %8 : vector<4x128xf32>
    %42 = math.tanh %41 : vector<4x128xf32>
    %43 = vector.extract_strided_slice %39 {offsets = [0, 0], sizes = [4, 128], strides = [1, 1]} : vector<4x256xf32> to vector<4x128xf32>
    %44 = arith.addf %24, %43 : vector<4x128xf32>
    %c0_26 = arith.constant 0 : index
    %c0_27 = arith.constant 0 : index
    %45 = vector.load %arg4[%c0_26, %c0_27] : memref<128x128xf32, #tpu.memory_space<vmem>>, vector<128x128xf32>
    %cst_28 = arith.constant dense<0.000000e+00> : vector<4x128xf32>
    %46 = tpu.matmul %42, %45, %cst_28 {dimension_numbers = #tpu.dot_dimension_numbers<[1], [0], [0], [1], [0, 0, 1, 1], [], []>} : vector<4x128xf32>, vector<128x128xf32>, vector<4x128xf32> -> vector<4x128xf32>
    %47 = arith.addf %44, %46 : vector<4x128xf32>
    %48 = arith.addf %47, %5 : vector<4x128xf32>
    %c0_29 = arith.constant 0 : index
    %c0_30 = arith.constant 0 : index
    %49 = vector.load %arg3[%c0_29, %c0_30] : memref<128x256xf32, #tpu.memory_space<vmem>>, vector<128x256xf32>
    %cst_31 = arith.constant dense<0.000000e+00> : vector<4x256xf32>
    %50 = tpu.matmul %35, %49, %cst_31 {dimension_numbers = #tpu.dot_dimension_numbers<[1], [0], [0], [1], [0, 0, 1, 1], [], []>} : vector<4x128xf32>, vector<128x256xf32>, vector<4x256xf32> -> vector<4x256xf32>
    %51 = vector.extract_strided_slice %50 {offsets = [0, 128], sizes = [4, 128], strides = [1, 1]} : vector<4x256xf32> to vector<4x128xf32>
    %52 = arith.addf %51, %8 : vector<4x128xf32>
    %53 = math.tanh %52 : vector<4x128xf32>
    %54 = vector.extract_strided_slice %50 {offsets = [0, 0], sizes = [4, 128], strides = [1, 1]} : vector<4x256xf32> to vector<4x128xf32>
    %55 = arith.addf %35, %54 : vector<4x128xf32>
    %c0_32 = arith.constant 0 : index
    %c0_33 = arith.constant 0 : index
    %56 = vector.load %arg4[%c0_32, %c0_33] : memref<128x128xf32, #tpu.memory_space<vmem>>, vector<128x128xf32>
    %cst_34 = arith.constant dense<0.000000e+00> : vector<4x128xf32>
    %57 = tpu.matmul %53, %56, %cst_34 {dimension_numbers = #tpu.dot_dimension_numbers<[1], [0], [0], [1], [0, 0, 1, 1], [], []>} : vector<4x128xf32>, vector<128x128xf32>, vector<4x128xf32> -> vector<4x128xf32>
    %58 = arith.addf %55, %57 : vector<4x128xf32>
    %59 = arith.addf %58, %5 : vector<4x128xf32>
    %c0_35 = arith.constant 0 : index
    %c256 = arith.constant 256 : index
    %60 = vector.load %arg7[%c0_35, %c256] : memref<8x512xf32, #tpu.memory_space<vmem>>, vector<4x128xf32>
    tpu.vector_store %arg7[%c0_35, %c256], %48 {strides = array<i32>} : memref<8x512xf32, #tpu.memory_space<vmem>>, vector<4x128xf32>,
    %c4_36 = arith.constant 4 : index
    %c256_37 = arith.constant 256 : index
    %61 = vector.load %arg7[%c4_36, %c256_37] : memref<8x512xf32, #tpu.memory_space<vmem>>, vector<4x128xf32>
    tpu.vector_store %arg7[%c4_36, %c256_37], %59 {strides = array<i32>} : memref<8x512xf32, #tpu.memory_space<vmem>>, vector<4x128xf32>,
    %c0_38 = arith.constant 0 : index
    %c0_39 = arith.constant 0 : index
    %62 = vector.load %arg3[%c0_38, %c0_39] : memref<128x256xf32, #tpu.memory_space<vmem>>, vector<128x256xf32>
    %cst_40 = arith.constant dense<0.000000e+00> : vector<4x256xf32>
    %63 = tpu.matmul %48, %62, %cst_40 {dimension_numbers = #tpu.dot_dimension_numbers<[1], [0], [0], [1], [0, 0, 1, 1], [], []>} : vector<4x128xf32>, vector<128x256xf32>, vector<4x256xf32> -> vector<4x256xf32>
    %64 = vector.extract_strided_slice %63 {offsets = [0, 128], sizes = [4, 128], strides = [1, 1]} : vector<4x256xf32> to vector<4x128xf32>
    %65 = arith.addf %64, %8 : vector<4x128xf32>
    %66 = math.tanh %65 : vector<4x128xf32>
    %67 = vector.extract_strided_slice %63 {offsets = [0, 0], sizes = [4, 128], strides = [1, 1]} : vector<4x256xf32> to vector<4x128xf32>
    %68 = arith.addf %48, %67 : vector<4x128xf32>
    %c0_41 = arith.constant 0 : index
    %c0_42 = arith.constant 0 : index
    %69 = vector.load %arg4[%c0_41, %c0_42] : memref<128x128xf32, #tpu.memory_space<vmem>>, vector<128x128xf32>
    %cst_43 = arith.constant dense<0.000000e+00> : vector<4x128xf32>
    %70 = tpu.matmul %66, %69, %cst_43 {dimension_numbers = #tpu.dot_dimension_numbers<[1], [0], [0], [1], [0, 0, 1, 1], [], []>} : vector<4x128xf32>, vector<128x128xf32>, vector<4x128xf32> -> vector<4x128xf32>
    %71 = arith.addf %68, %70 : vector<4x128xf32>
    %72 = arith.addf %71, %5 : vector<4x128xf32>
    %c0_44 = arith.constant 0 : index
    %c0_45 = arith.constant 0 : index
    %73 = vector.load %arg3[%c0_44, %c0_45] : memref<128x256xf32, #tpu.memory_space<vmem>>, vector<128x256xf32>
    %cst_46 = arith.constant dense<0.000000e+00> : vector<4x256xf32>
    %74 = tpu.matmul %59, %73, %cst_46 {dimension_numbers = #tpu.dot_dimension_numbers<[1], [0], [0], [1], [0, 0, 1, 1], [], []>} : vector<4x128xf32>, vector<128x256xf32>, vector<4x256xf32> -> vector<4x256xf32>
    %75 = vector.extract_strided_slice %74 {offsets = [0, 128], sizes = [4, 128], strides = [1, 1]} : vector<4x256xf32> to vector<4x128xf32>
    %76 = arith.addf %75, %8 : vector<4x128xf32>
    %77 = math.tanh %76 : vector<4x128xf32>
    %78 = vector.extract_strided_slice %74 {offsets = [0, 0], sizes = [4, 128], strides = [1, 1]} : vector<4x256xf32> to vector<4x128xf32>
    %79 = arith.addf %59, %78 : vector<4x128xf32>
    %c0_47 = arith.constant 0 : index
    %c0_48 = arith.constant 0 : index
    %80 = vector.load %arg4[%c0_47, %c0_48] : memref<128x128xf32, #tpu.memory_space<vmem>>, vector<128x128xf32>
    %cst_49 = arith.constant dense<0.000000e+00> : vector<4x128xf32>
    %81 = tpu.matmul %77, %80, %cst_49 {dimension_numbers = #tpu.dot_dimension_numbers<[1], [0], [0], [1], [0, 0, 1, 1], [], []>} : vector<4x128xf32>, vector<128x128xf32>, vector<4x128xf32> -> vector<4x128xf32>
    %82 = arith.addf %79, %81 : vector<4x128xf32>
    %83 = arith.addf %82, %5 : vector<4x128xf32>
    %c0_50 = arith.constant 0 : index
    %c384 = arith.constant 384 : index
    %84 = vector.load %arg7[%c0_50, %c384] : memref<8x512xf32, #tpu.memory_space<vmem>>, vector<4x128xf32>
    tpu.vector_store %arg7[%c0_50, %c384], %72 {strides = array<i32>} : memref<8x512xf32, #tpu.memory_space<vmem>>, vector<4x128xf32>,
    %c4_51 = arith.constant 4 : index
    %c384_52 = arith.constant 384 : index
    %85 = vector.load %arg7[%c4_51, %c384_52] : memref<8x512xf32, #tpu.memory_space<vmem>>, vector<4x128xf32>
    tpu.vector_store %arg7[%c4_51, %c384_52], %83 {strides = array<i32>} : memref<8x512xf32, #tpu.memory_space<vmem>>, vector<4x128xf32>,
    %c1_i32 = arith.constant 1 : i32
    %86 = arith.addi %arg1, %c1_i32 : i32
    %c2_i32 = arith.constant 2 : i32
    %87 = arith.cmpi slt, %86, %c2_i32 : i32
    %88 = arith.extui %87 : i1 to i32
    %c0_i32_53 = arith.constant 0 : i32
    %89 = arith.cmpi ne, %88, %c0_i32_53 : i32
    scf.if %89 {
      %c0_54 = arith.constant 0 : index
      %c0_55 = arith.constant 0 : index
      %90 = vector.load %arg3[%c0_54, %c0_55] : memref<128x256xf32, #tpu.memory_space<vmem>>, vector<128x256xf32>
      %cst_56 = arith.constant dense<0.000000e+00> : vector<4x256xf32>
      %91 = tpu.matmul %72, %90, %cst_56 {dimension_numbers = #tpu.dot_dimension_numbers<[1], [0], [0], [1], [0, 0, 1, 1], [], []>} : vector<4x128xf32>, vector<128x256xf32>, vector<4x256xf32> -> vector<4x256xf32>
      %92 = vector.extract_strided_slice %91 {offsets = [0, 128], sizes = [4, 128], strides = [1, 1]} : vector<4x256xf32> to vector<4x128xf32>
      %93 = arith.addf %92, %8 : vector<4x128xf32>
      %94 = math.tanh %93 : vector<4x128xf32>
      %95 = vector.extract_strided_slice %91 {offsets = [0, 0], sizes = [4, 128], strides = [1, 1]} : vector<4x256xf32> to vector<4x128xf32>
      %96 = arith.addf %72, %95 : vector<4x128xf32>
      %c0_57 = arith.constant 0 : index
      %c0_58 = arith.constant 0 : index
      %97 = vector.load %arg4[%c0_57, %c0_58] : memref<128x128xf32, #tpu.memory_space<vmem>>, vector<128x128xf32>
      %cst_59 = arith.constant dense<0.000000e+00> : vector<4x128xf32>
      %98 = tpu.matmul %94, %97, %cst_59 {dimension_numbers = #tpu.dot_dimension_numbers<[1], [0], [0], [1], [0, 0, 1, 1], [], []>} : vector<4x128xf32>, vector<128x128xf32>, vector<4x128xf32> -> vector<4x128xf32>
      %99 = arith.addf %96, %98 : vector<4x128xf32>
      %100 = arith.addf %99, %5 : vector<4x128xf32>
      %c0_60 = arith.constant 0 : index
      %c0_61 = arith.constant 0 : index
      %101 = vector.load %arg8[%c0_60, %c0_61] : memref<8x128xf32, #tpu.memory_space<vmem>>, vector<4x128xf32>
      tpu.vector_store %arg8[%c0_60, %c0_61], %100 {strides = array<i32>} : memref<8x128xf32, #tpu.memory_space<vmem>>, vector<4x128xf32>,
      %c0_62 = arith.constant 0 : index
      %c0_63 = arith.constant 0 : index
      %102 = vector.load %arg3[%c0_62, %c0_63] : memref<128x256xf32, #tpu.memory_space<vmem>>, vector<128x256xf32>
      %cst_64 = arith.constant dense<0.000000e+00> : vector<4x256xf32>
      %103 = tpu.matmul %83, %102, %cst_64 {dimension_numbers = #tpu.dot_dimension_numbers<[1], [0], [0], [1], [0, 0, 1, 1], [], []>} : vector<4x128xf32>, vector<128x256xf32>, vector<4x256xf32> -> vector<4x256xf32>
      %104 = vector.extract_strided_slice %103 {offsets = [0, 128], sizes = [4, 128], strides = [1, 1]} : vector<4x256xf32> to vector<4x128xf32>
      %105 = arith.addf %104, %8 : vector<4x128xf32>
      %106 = math.tanh %105 : vector<4x128xf32>
      %107 = vector.extract_strided_slice %103 {offsets = [0, 0], sizes = [4, 128], strides = [1, 1]} : vector<4x256xf32> to vector<4x128xf32>
      %108 = arith.addf %83, %107 : vector<4x128xf32>
      %c0_65 = arith.constant 0 : index
      %c0_66 = arith.constant 0 : index
      %109 = vector.load %arg4[%c0_65, %c0_66] : memref<128x128xf32, #tpu.memory_space<vmem>>, vector<128x128xf32>
      %cst_67 = arith.constant dense<0.000000e+00> : vector<4x128xf32>
      %110 = tpu.matmul %106, %109, %cst_67 {dimension_numbers = #tpu.dot_dimension_numbers<[1], [0], [0], [1], [0, 0, 1, 1], [], []>} : vector<4x128xf32>, vector<128x128xf32>, vector<4x128xf32> -> vector<4x128xf32>
      %111 = arith.addf %108, %110 : vector<4x128xf32>
      %112 = arith.addf %111, %5 : vector<4x128xf32>
      %c4_68 = arith.constant 4 : index
      %c0_69 = arith.constant 0 : index
      %113 = vector.load %arg8[%c4_68, %c0_69] : memref<8x128xf32, #tpu.memory_space<vmem>>, vector<4x128xf32>
      tpu.vector_store %arg8[%c4_68, %c0_69], %112 {strides = array<i32>} : memref<8x128xf32, #tpu.memory_space<vmem>>, vector<4x128xf32>,
    } else {
    }
    return
  }
  func.func @transform_0(%arg0: i32, %arg1: i32) -> (i32, i32) {
    %c0_i32 = arith.constant 0 : i32
    %c0_i32_0 = arith.constant 0 : i32
    return %arg0, %c0_i32 : i32, i32
  }
  func.func @transform_1(%arg0: i32, %arg1: i32) -> (i32, i32) {
    %c0_i32 = arith.constant 0 : i32
    %c0_i32_0 = arith.constant 0 : i32
    %c0_i32_1 = arith.constant 0 : i32
    return %c0_i32, %c0_i32_0 : i32, i32
  }
  func.func @transform_2(%arg0: i32, %arg1: i32) -> (i32, i32) {
    %c0_i32 = arith.constant 0 : i32
    %c0_i32_0 = arith.constant 0 : i32
    %c0_i32_1 = arith.constant 0 : i32
    return %c0_i32, %c0_i32_0 : i32, i32
  }
  func.func @transform_3(%arg0: i32, %arg1: i32) -> (i32, i32) {
    %c0_i32 = arith.constant 0 : i32
    %c0_i32_0 = arith.constant 0 : i32
    %c0_i32_1 = arith.constant 0 : i32
    return %c0_i32, %c0_i32_0 : i32, i32
  }
  func.func @transform_4(%arg0: i32, %arg1: i32) -> (i32, i32) {
    %c0_i32 = arith.constant 0 : i32
    %c0_i32_0 = arith.constant 0 : i32
    %c0_i32_1 = arith.constant 0 : i32
    return %c0_i32, %c0_i32_0 : i32, i32
  }
  func.func @transform_5(%arg0: i32, %arg1: i32) -> (i32, i32) {
    %c0_i32 = arith.constant 0 : i32
    return %arg0, %arg1 : i32, i32
  }
}

</mosaic_0001>

<llo_original>
// kernel: tpu_custom_call.1
$region0: #{tpu_custom_call.1}
  #allocation0 [shape = 'u32[]', space=smem, size = 0x4, offset = 0x4, fixed_abs, tag = 'smem constant byte address 0x4 - core index']
  #allocation1 [shape = 'u32[144,128]{1,0:T(1,128)}', space=vmem, size = 0x12000, scoped, tag = 'internal scratch']
  #allocation2 [shape = 'f32[8,128]{1,0:T(8,128)}', space=vmem, size = 0x1000, scoped, tag = 'scratch operand']
  %s0 = inlined_call_operand.hbm [shape: f32[16,128], index: 0, kind: input, shape index: {}]
  %s1 = inlined_call_operand.hbm [shape: f32[128,256], index: 1, kind: input, shape index: {}]
  %s2 = inlined_call_operand.hbm [shape: f32[128,128], index: 2, kind: input, shape index: {}]
  %s3 = inlined_call_operand.vmem [shape: f32[1,128], index: 3, kind: input, shape index: {}]
  %s4 = inlined_call_operand.vmem [shape: f32[1,128], index: 4, kind: input, shape index: {}]
  %s5 = inlined_call_operand.hbm [shape: f32[16,1024], index: 5, kind: output, shape index: {}]
  %s6 = sld [smem:[#allocation0]]
  $region73: #{tpu_custom_call.1} parent=0
    _
  %s8 = ssub.s32 1, %s6
  %s9 = scalar_select 0, %s8, %s6
  $region1: #{tpu_custom_call.1} parent=0
    #allocation3 [shape = 'u8[8192]{0}', space=vmem, size = 0x2000, scoped, tag = 'input window, operand 0']
    #allocation4 [shape = 's32[2]{0}', space=sflag, size = 0x8, scoped, tag = 'scoped memory for tpu_custom_call.1']
    #allocation5 [shape = 's32[2]{0}', space=sflag, size = 0x8, scoped, tag = 'scoped memory for tpu_custom_call.1']
    #allocation6 [shape = 'u8[131072]{0}', space=vmem, size = 0x20000, scoped, tag = 'input window, operand 1, single buffered']
    #allocation7 [shape = 's32[1]{0}', space=sflag, size = 0x4, scoped, tag = 'scoped memory for tpu_custom_call.1']
    #allocation8 [shape = 'u8[65536]{0}', space=vmem, size = 0x10000, scoped, tag = 'input window, operand 2, single buffered']
    #allocation9 [shape = 'u8[32768]{0}', space=vmem, size = 0x8000, scoped, tag = 'output window, operand 0']
    %10 = vsyncpa [#allocation4], 0
    %s11 = scalar_lea.sflag [#allocation4], 1
    %12 = vsyncpa %s11, 0
    %13 = vsyncpa [#allocation7], 0
    %14 = vsyncpa [#allocation5], 0
    %s15 = scalar_lea.sflag [#allocation5], 1
    %16 = vsyncpa %s15, 0
    loop: start=0, step=1, limit=6
    $region2: #{tpu_custom_call.1} parent=1 // loop_pre_header
      _
    $region3: #{tpu_custom_call.1} parent=1 // loop_header
      %s18 = sphi 0, %s22
      %p19 = scmp.ge.s32.totalorder %s18, 6
      %s25 = sphi 0, %s37
      %s26 = sphi 0, %s33
      %s27 = sphi 0, %s25
      %s28 = sphi 0, %s26
      %s29 = sphi 0, %s27
      %s30 = sphi 0, %s28
      %s40 = sphi 0, %s42
      %s43 = sphi 0, %s40
      %s44 = sphi 0, %s43
      %s60 = sphi 0, %s44
      %s64 = sphi 0, %s64
      %s66 = sphi 0, %s64
      %s67 = sphi 0, %s66
      %s81 = sphi 0, %s67
      %s85 = sphi 0, %s85
      %s87 = sphi 0, %s85
      %s88 = sphi 0, %s87
      %s102 = sphi 0, %s88
      %s106 = sphi 0, %s106
      %s108 = sphi 0, %s106
      %s109 = sphi 0, %s108
      %s123 = sphi 0, %s109
      %s127 = sphi 0, %s127
      %s129 = sphi 0, %s127
      %s130 = sphi 0, %s129
      %s144 = sphi 0, %s130
      %s152 = sphi 0, %s154
      %s155 = sphi 0, %s152
      %s156 = sphi 0, %s155
      %s172 = sphi 0, %s156
    $region4: #{tpu_custom_call.1} parent=1 // loop_header_branch
      %21 = sbr.rel (%p19) target = $region8
    $region5: #{tpu_custom_call.1} parent=1 // loop_body
      %s23 = ssub.s32 %s18, 1
      %s24 = ssub.s32 %s18, 2
      %s31 = sadd.s32 1, %s26
      %p32 = scmp.ge.s32.totalorder %s31, 2
      %s33 = scalar_select %p32, 0, %s31
      %s34 = sadd.s32 1, %s25
      %s35 = scalar_select %p32, %s34, %s25
      %p36 = scmp.ge.s32.totalorder %s35, 2
      %s37 = scalar_select %p36, 0, %s35
      %s38 = ssub.s32 %s25, %s37
      %p39 = scmp.eq.s32.totalorder %s38, 0
      %s41 = sadd.s32 %s40, 1
      %s42 = scalar_select %p39, %s40, %s41
      %p45 = pneg %p39
      %p46 = scmp.eq.s32.totalorder %s18, 3
      %p47 = por %p45, %p46
      %p48 = scmp.ne.s32.totalorder %s40, %s43
      %p49 = scmp.eq.s32.totalorder %s18, 0
      %p50 = por %p48, %p49
      %p51 = scmp.ne.s32.totalorder %s40, %s43
      %p52 = scmp.eq.s32.totalorder %s23, 3
      %p53 = por %p51, %p52
      %p54 = scmp.ne.s32.totalorder %s43, %s44
      %p55 = scmp.eq.s32.totalorder %s23, 0
      %p56 = por %p54, %p55
      %p57 = scmp.ne.s32.totalorder %s43, %s44
      %p58 = scmp.eq.s32.totalorder %s24, 3
      %p59 = por %p57, %p58
      %p61 = scmp.ne.s32.totalorder %s44, %s60
      %p62 = scmp.eq.s32.totalorder %s24, 0
      %p63 = por %p61, %p62
      %s65 = sadd.s32 %s64, 1
      %p68 = scmp.eq.s32.totalorder %s18, 3
      %p69 = scmp.ne.s32.totalorder %s64, %s66
      %p70 = scmp.eq.s32.totalorder %s18, 0
      %p71 = por %p69, %p70
      %p72 = scmp.ne.s32.totalorder %s64, %s66
      %p73 = scmp.eq.s32.totalorder %s23, 3
      %p74 = por %p72, %p73
      %p75 = scmp.ne.s32.totalorder %s66, %s67
      %p76 = scmp.eq.s32.totalorder %s23, 0
      %p77 = por %p75, %p76
      %p78 = scmp.ne.s32.totalorder %s66, %s67
      %p79 = scmp.eq.s32.totalorder %s24, 3
      %p80 = por %p78, %p79
      %p82 = scmp.ne.s32.totalorder %s67, %s81
      %p83 = scmp.eq.s32.totalorder %s24, 0
      %p84 = por %p82, %p83
      %s86 = sadd.s32 %s85, 1
      %p89 = scmp.eq.s32.totalorder %s18, 3
      %p90 = scmp.ne.s32.totalorder %s85, %s87
      %p91 = scmp.eq.s32.totalorder %s18, 0
      %p92 = por %p90, %p91
      %p93 = scmp.ne.s32.totalorder %s85, %s87
      %p94 = scmp.eq.s32.totalorder %s23, 3
      %p95 = por %p93, %p94
      %p96 = scmp.ne.s32.totalorder %s87, %s88
      %p97 = scmp.eq.s32.totalorder %s23, 0
      %p98 = por %p96, %p97
      %p99 = scmp.ne.s32.totalorder %s87, %s88
      %p100 = scmp.eq.s32.totalorder %s24, 3
      %p101 = por %p99, %p100
      %p103 = scmp.ne.s32.totalorder %s88, %s102
      %p104 = scmp.eq.s32.totalorder %s24, 0
      %p105 = por %p103, %p104
      %s107 = sadd.s32 %s106, 1
      %p110 = scmp.eq.s32.totalorder %s18, 3
      %p111 = scmp.ne.s32.totalorder %s106, %s108
      %p112 = scmp.eq.s32.totalorder %s18, 0
      %p113 = por %p111, %p112
      %p114 = scmp.ne.s32.totalorder %s106, %s108
      %p115 = scmp.eq.s32.totalorder %s23, 3
      %p116 = por %p114, %p115
      %p117 = scmp.ne.s32.totalorder %s108, %s109
      %p118 = scmp.eq.s32.totalorder %s23, 0
      %p119 = por %p117, %p118
      %p120 = scmp.ne.s32.totalorder %s108, %s109
      %p121 = scmp.eq.s32.totalorder %s24, 3
      %p122 = por %p120, %p121
      %p124 = scmp.ne.s32.totalorder %s109, %s123
      %p125 = scmp.eq.s32.totalorder %s24, 0
      %p126 = por %p124, %p125
      %s128 = sadd.s32 %s127, 1
      %p131 = scmp.eq.s32.totalorder %s18, 3
      %p132 = scmp.ne.s32.totalorder %s127, %s129
      %p133 = scmp.eq.s32.totalorder %s18, 0
      %p134 = por %p132, %p133
      %p135 = scmp.ne.s32.totalorder %s127, %s129
      %p136 = scmp.eq.s32.totalorder %s23, 3
      %p137 = por %p135, %p136
      %p138 = scmp.ne.s32.totalorder %s129, %s130
      %p139 = scmp.eq.s32.totalorder %s23, 0
      %p140 = por %p138, %p139
      %p141 = scmp.ne.s32.totalorder %s129, %s130
      %p142 = scmp.eq.s32.totalorder %s24, 3
      %p143 = por %p141, %p142
      %p145 = scmp.ne.s32.totalorder %s130, %s144
      %p146 = scmp.eq.s32.totalorder %s24, 0
      %p147 = por %p145, %p146
      %s148 = ssub.s32 %s25, %s37
      %s149 = ssub.s32 %s26, %s33
      %s150 = sor.u32 %s148, %s149
      %p151 = scmp.eq.s32.totalorder %s150, 0
      %s153 = sadd.s32 %s152, 1
      %s154 = scalar_select %p151, %s152, %s153
      %p157 = pneg %p151
      %p158 = scmp.eq.s32.totalorder %s18, 3
      %p159 = por %p157, %p158
      %p160 = scmp.ne.s32.totalorder %s152, %s155
      %p161 = scmp.eq.s32.totalorder %s18, 0
      %p162 = por %p160, %p161
      %p163 = scmp.ne.s32.totalorder %s152, %s155
      %p164 = scmp.eq.s32.totalorder %s23, 3
      %p165 = por %p163, %p164
      %p166 = scmp.ne.s32.totalorder %s155, %s156
      %p167 = scmp.eq.s32.totalorder %s23, 0
      %p168 = por %p166, %p167
      %p169 = scmp.ne.s32.totalorder %s155, %s156
      %p170 = scmp.eq.s32.totalorder %s24, 3
      %p171 = por %p169, %p170
      %p173 = scmp.ne.s32.totalorder %s156, %s172
      %p174 = scmp.eq.s32.totalorder %s24, 0
      %p175 = por %p173, %p174
      %p176 = scmp.le.s32.totalorder 1, %s18
      %p177 = scmp.lt.s32.totalorder %s18, 5
      %p178 = pnand %p176, %p177
      %p179 = pneg %p178
      // Predicated region
      $region9: #{tpu_custom_call.1} parent=5 // pred_check
        _
      $region10: #{tpu_custom_call.1} parent=5 // pred_check_branch
        %181 = sbr.rel (%p178) target = $region12
      $region11: #{tpu_custom_call.1} parent=5 // pred_region
        %s182 = ssub.s32 %s18, 1
        // Predicated region
        $region13: #{tpu_custom_call.1} parent=11 // pred_check
          %p183 = pneg %p77
        $region14: #{tpu_custom_call.1} parent=11 // pred_check_branch
          %185 = sbr.rel (%p183) target = $region16
        $region15: #{tpu_custom_call.1} parent=11 // pred_region
          %s187 = ssub.s32 4096, 4096
          %188 = vsyncadd [#allocation7], %s187
          %s189 = sshll.u32 [#allocation6], 4
          %s190 = int_to_ptr.vmem [resolvable:$true] %s189
          %195 = dma.hbm_to_vmem [thread:$0]  %s1, 4096, %s190, [#allocation7], 256, 256, 16
        $region16: #{tpu_custom_call.1} parent=11 // pred_fallthru
          _
        // Predicated region
        $region17: #{tpu_custom_call.1} parent=11 // pred_check
          %p196 = pneg %p98
        $region18: #{tpu_custom_call.1} parent=11 // pred_check_branch
          %198 = sbr.rel (%p196) target = $region20
        $region19: #{tpu_custom_call.1} parent=11 // pred_region
          %s200 = ssub.s32 2048, 2048
          %201 = vsyncadd [#allocation7], %s200
          %s202 = sshll.u32 [#allocation8], 4
          %s203 = int_to_ptr.vmem [resolvable:$true] %s202
          %208 = dma.hbm_to_vmem [thread:$0]  %s2, 2048, %s203, [#allocation7], 128, 128, 8
        $region20: #{tpu_custom_call.1} parent=11 // pred_fallthru
          _
        // Predicated region
        $region21: #{tpu_custom_call.1} parent=11 // pred_check
          %p209 = pneg %p119
        $region22: #{tpu_custom_call.1} parent=11 // pred_check_branch
          %211 = sbr.rel (%p209) target = $region24
        $region23: #{tpu_custom_call.1} parent=11 // pred_region
          _
        $region24: #{tpu_custom_call.1} parent=11 // pred_fallthru
          _
        // Predicated region
        $region25: #{tpu_custom_call.1} parent=11 // pred_check
          %p212 = pneg %p140
        $region26: #{tpu_custom_call.1} parent=11 // pred_check_branch
          %214 = sbr.rel (%p212) target = $region28
        $region27: #{tpu_custom_call.1} parent=11 // pred_region
          _
        $region28: #{tpu_custom_call.1} parent=11 // pred_fallthru
          _
      $region12: #{tpu_custom_call.1} parent=5 // pred_fallthru
        _
      %p215 = scmp.lt.s32.totalorder %s18, 4
      // Predicated region
      $region29: #{tpu_custom_call.1} parent=5 // pred_check
        %p216 = pneg %p215
      $region30: #{tpu_custom_call.1} parent=5 // pred_check_branch
        %218 = sbr.rel (%p216) target = $region32
      $region31: #{tpu_custom_call.1} parent=5 // pred_region
        // Predicated region
        $region33: #{tpu_custom_call.1} parent=31 // pred_check
          %p219 = pneg %p50
        $region34: #{tpu_custom_call.1} parent=31 // pred_check_branch
          %221 = sbr.rel (%p219) target = $region36
        $region35: #{tpu_custom_call.1} parent=31 // pred_region
          %s222 = sand.u32 %s40, 1
          %s223 = scalar_lea.sflag [#allocation4], %s222
          %s224 = sand.u32 %s40, 1
          %s225 = smul.addr %s224, 8
          %s226 = scalar_lea.vmem [#allocation3], %s225
          %s228 = ssub.s32 128, 128
          %229 = vsyncadd %s223, %s228
          %s230 = smul.addr %s25, 128
          %s231 = scalar_lea.hbm %s0, %s230
          %s233 = sshll.u32 %s226, 4
          %s234 = int_to_ptr.vmem [resolvable:$true] %s233
          %236 = dma.hbm_to_vmem [thread:$0]  %s231, 128, %s234, %s223
        $region36: #{tpu_custom_call.1} parent=31 // pred_fallthru
          _
      $region32: #{tpu_custom_call.1} parent=5 // pred_fallthru
        _
      %p237 = scmp.le.s32.totalorder 1, %s18
      %p238 = scmp.lt.s32.totalorder %s18, 5
      %p239 = pnand %p237, %p238
      %p240 = pneg %p239
      // Predicated region
      $region37: #{tpu_custom_call.1} parent=5 // pred_check
        _
      $region38: #{tpu_custom_call.1} parent=5 // pred_check_branch
        %242 = sbr.rel (%p239) target = $region40
      $region39: #{tpu_custom_call.1} parent=5 // pred_region
        %s243 = ssub.s32 %s18, 1
        %s244 = sand.u32 %s43, 1
        %s245 = scalar_lea.sflag [#allocation4], %s244
        %s246 = sand.u32 %s43, 1
        %s247 = smul.addr %s246, 8
        %s248 = scalar_lea.vmem [#allocation3], %s247
        // Predicated region
        $region41: #{tpu_custom_call.1} parent=39 // pred_check
          %p249 = pneg %p56
        $region42: #{tpu_custom_call.1} parent=39 // pred_check_branch
          %251 = sbr.rel (%p249) target = $region44
        $region43: #{tpu_custom_call.1} parent=39 // pred_region
          %252 = dma.done %s245, 128
        $region44: #{tpu_custom_call.1} parent=39 // pred_fallthru
          _
        // Predicated region
        $region45: #{tpu_custom_call.1} parent=39 // pred_check
          %p253 = pneg %p77
        $region46: #{tpu_custom_call.1} parent=39 // pred_check_branch
          %255 = sbr.rel (%p253) target = $region48
        $region47: #{tpu_custom_call.1} parent=39 // pred_region
          %256 = dma.done [#allocation7], 4096
        $region48: #{tpu_custom_call.1} parent=39 // pred_fallthru
          _
        // Predicated region
        $region49: #{tpu_custom_call.1} parent=39 // pred_check
          %p257 = pneg %p98
        $region50: #{tpu_custom_call.1} parent=39 // pred_check_branch
          %259 = sbr.rel (%p257) target = $region52
        $region51: #{tpu_custom_call.1} parent=39 // pred_region
          %260 = dma.done [#allocation7], 2048
        $region52: #{tpu_custom_call.1} parent=39 // pred_fallthru
          _
        %s261 = sand.u32 %s43, 1
        %s262 = scalar_lea.sflag [#allocation4], %s261
        %s263 = sand.u32 %s43, 1
        %s264 = smul.addr %s263, 8
        %s265 = scalar_lea.vmem [#allocation3], %s264
        %p266 = pneg %p56
        %p267 = pneg %p53
        %p268 = pneg %p77
        %p269 = pneg %p74
        %p270 = pneg %p98
        %p271 = pneg %p95
        %p272 = pneg %p119
        %p273 = pneg %p116
        %p274 = pneg %p140
        %p275 = pneg %p137
        %p276 = pneg %p168
        %p277 = pneg %p165
        %s278 = sand.u32 %s155, 1
        %s279 = scalar_lea.sflag [#allocation5], %s278
        %s280 = sand.u32 %s155, 1
        %s281 = smul.addr %s280, 32
        %s282 = scalar_lea.vmem [#allocation9], %s281
        %s283 = smul.u32 4, %s28
        %p284 = scmp.eq.s32.totalorder %s28, 0
        // Predicated region
        $region53: #{tpu_custom_call.1} parent=39 // pred_check
          %p285 = pneg %p284
        $region54: #{tpu_custom_call.1} parent=39 // pred_check_branch
          %287 = sbr.rel (%p285) target = $region56
        $region55: #{tpu_custom_call.1} parent=39 // pred_region
          %v288 = vld [vmem:[%s248] sm:$0xff]
          %289 = vst [vmem:[#allocation2] sm:$0xff] %v288
        $region56: #{tpu_custom_call.1} parent=39 // pred_fallthru
          _
        %v290 = vld [vmem:[%s3] sm:$0x1]
        %v292 = vlaneseq
        %v293 = vshrl.u32 %v292, 7
        %v294 = vsub.s32 0, %v293
        %v295 = vrot.slane %v290, %v294
        %v297 = vld [vmem:[%s4] sm:$0x1]
        %v299 = vlaneseq
        %v300 = vshrl.u32 %v299, 7
        %v301 = vsub.s32 0, %v300
        %v302 = vrot.slane %v297, %v301
        %v304 = vld [vmem:[#allocation2] sm:$0xff]
        %305 = vst [vmem:[%s282] sm:$0xf] %v304
        %306 = vst [vmem:[%s282] sm:$0xf0] %v304
        %v307 = vld [vmem:[#allocation6] sm:$0xff]
        %v308 = vld [vmem:[#allocation6 + $0x8] sm:$0xff]
        %v309 = vld [vmem:[#allocation6 + $0x10] sm:$0xff]
        %v310 = vld [vmem:[#allocation6 + $0x18] sm:$0xff]
        %v311 = vld [vmem:[#allocation6 + $0x20] sm:$0xff]
        %v312 = vld [vmem:[#allocation6 + $0x28] sm:$0xff]
        %v313 = vld [vmem:[#allocation6 + $0x30] sm:$0xff]
        %v314 = vld [vmem:[#allocation6 + $0x38] sm:$0xff]
        %v315 = vld [vmem:[#allocation6 + $0x40] sm:$0xff]
        %v316 = vld [vmem:[#allocation6 + $0x48] sm:$0xff]
        %v317 = vld [vmem:[#allocation6 + $0x50] sm:$0xff]
        %v318 = vld [vmem:[#allocation6 + $0x58] sm:$0xff]
        %v319 = vld [vmem:[#allocation6 + $0x60] sm:$0xff]
        %v320 = vld [vmem:[#allocation6 + $0x68] sm:$0xff]
        %v321 = vld [vmem:[#allocation6 + $0x70] sm:$0xff]
        %v322 = vld [vmem:[#allocation6 + $0x78] sm:$0xff]
        %v323 = vld [vmem:[#allocation6 + $0x80] sm:$0xff]
        %v324 = vld [vmem:[#allocation6 + $0x88] sm:$0xff]
        %v325 = vld [vmem:[#allocation6 + $0x90] sm:$0xff]
        %v326 = vld [vmem:[#allocation6 + $0x98] sm:$0xff]
        %v327 = vld [vmem:[#allocation6 + $0xa0] sm:$0xff]
        %v328 = vld [vmem:[#allocation6 + $0xa8] sm:$0xff]
        %v329 = vld [vmem:[#allocation6 + $0xb0] sm:$0xff]
        %v330 = vld [vmem:[#allocation6 + $0xb8] sm:$0xff]
        %v331 = vld [vmem:[#allocation6 + $0xc0] sm:$0xff]
        %v332 = vld [vmem:[#allocation6 + $0xc8] sm:$0xff]
        %v333 = vld [vmem:[#allocation6 + $0xd0] sm:$0xff]
        %v334 = vld [vmem:[#allocation6 + $0xd8] sm:$0xff]
        %v335 = vld [vmem:[#allocation6 + $0xe0] sm:$0xff]
        %v336 = vld [vmem:[#allocation6 + $0xe8] sm:$0xff]
        %v337 = vld [vmem:[#allocation6 + $0xf0] sm:$0xff]
        %v338 = vld [vmem:[#allocation6 + $0xf8] sm:$0xff]
        %339 = vmatprep.subr.mxu0 %v308
        %340 = vmatpush1.msra.mxu0 %v307
        %341 = vmatprep.subr.mxu0 %v310
        %342 = vmatpush1.msra.mxu0 %v309
        %343 = vmatprep.subr.mxu0 %v312
        %344 = vmatpush1.msra.mxu0 %v311
        %345 = vmatprep.subr.mxu0 %v314
        %346 = vmatpush1.msra.mxu0 %v313
        %347 = vmatprep.subr.mxu0 %v316
        %348 = vmatpush1.msra.mxu0 %v315
        %349 = vmatprep.subr.mxu0 %v318
        %350 = vmatpush1.msra.mxu0 %v317
        %351 = vmatprep.subr.mxu0 %v320
        %352 = vmatpush1.msra.mxu0 %v319
        %353 = vmatprep.subr.mxu0 %v322
        %354 = vmatpush1.msra.mxu0 %v321
        %355 = vmatprep.subr.mxu0 %v324
        %356 = vmatpush1.msra.mxu0 %v323
        %357 = vmatprep.subr.mxu0 %v326
        %358 = vmatpush1.msra.mxu0 %v325
        %359 = vmatprep.subr.mxu0 %v328
        %360 = vmatpush1.msra.mxu0 %v327
        %361 = vmatprep.subr.mxu0 %v330
        %362 = vmatpush1.msra.mxu0 %v329
        %363 = vmatprep.subr.mxu0 %v332
        %364 = vmatpush1.msra.mxu0 %v331
        %365 = vmatprep.subr.mxu0 %v334
        %366 = vmatpush1.msra.mxu0 %v333
        %367 = vmatprep.subr.mxu0 %v336
        %368 = vmatpush1.msra.mxu0 %v335
        %369 = vmatprep.subr.mxu0 %v338
        %370 = vmatpush1.msra.mxu0 %v337
        %371 = vmatprep.subr.mxu0 0.0
        %372 = vmatpush1.msra.mxu0 0.0
        %373 = vmatprep.subr.mxu0 0.0
        %374 = vmatpush1.msra.mxu0 0.0
        %375 = vmatprep.subr.mxu0 0.0
        %376 = vmatpush1.msra.mxu0 0.0
        %377 = vmatprep.subr.mxu0 0.0
        %378 = vmatpush1.msra.mxu0 0.0
        %379 = vmatprep.subr.mxu0 0.0
        %380 = vmatpush1.msra.mxu0 0.0
        %381 = vmatprep.subr.mxu0 0.0
        %382 = vmatpush1.msra.mxu0 0.0
        %383 = vmatprep.subr.mxu0 0.0
        %384 = vmatpush1.msra.mxu0 0.0
        %385 = vmatprep.subr.mxu0 0.0
        %386 = vmatpush1.msra.mxu0 0.0
        %387 = vmatprep.subr.mxu0 0.0
        %388 = vmatpush1.msra.mxu0 0.0
        %389 = vmatprep.subr.mxu0 0.0
        %390 = vmatpush1.msra.mxu0 0.0
        %391 = vmatprep.subr.mxu0 0.0
        %392 = vmatpush1.msra.mxu0 0.0
        %393 = vmatprep.subr.mxu0 0.0
        %394 = vmatpush1.msra.mxu0 0.0
        %395 = vmatprep.subr.mxu0 0.0
        %396 = vmatpush1.msra.mxu0 0.0
        %397 = vmatprep.subr.mxu0 0.0
        %398 = vmatpush1.msra.mxu0 0.0
        %399 = vmatprep.subr.mxu0 0.0
        %400 = vmatpush1.msra.mxu0 0.0
        %401 = vmatprep.subr.mxu0 0.0
        %402 = vmatpush1.msra.mxu0 0.0
        %403 = vmatprep.mubr.f32.mxu0 0.0
        %404 = vmatmul.mubr.f32.gmra.mrb[0].mxu0 %v304
        %v405 = vpop.f32.mrb[0].mxu0
        %v406 = vadd.f32 0.0, %v405
        %v407 = vpop.f32.mrb[0].mxu0
        %v408 = vadd.f32 0.0, %v407
        %409 = vdwg.mxu0
        %v410 = vadd.f32 %v408, %v302
        %v411 = vtanh.pop %v410
        %v412 = vadd.f32 %v304, %v406
        %v413 = vld [vmem:[#allocation8] sm:$0xff]
        %v414 = vld [vmem:[#allocation8 + $0x8] sm:$0xff]
        %v415 = vld [vmem:[#allocation8 + $0x10] sm:$0xff]
        %v416 = vld [vmem:[#allocation8 + $0x18] sm:$0xff]
        %v417 = vld [vmem:[#allocation8 + $0x20] sm:$0xff]
        %v418 = vld [vmem:[#allocation8 + $0x28] sm:$0xff]
        %v419 = vld [vmem:[#allocation8 + $0x30] sm:$0xff]
        %v420 = vld [vmem:[#allocation8 + $0x38] sm:$0xff]
        %v421 = vld [vmem:[#allocation8 + $0x40] sm:$0xff]
        %v422 = vld [vmem:[#allocation8 + $0x48] sm:$0xff]
        %v423 = vld [vmem:[#allocation8 + $0x50] sm:$0xff]
        %v424 = vld [vmem:[#allocation8 + $0x58] sm:$0xff]
        %v425 = vld [vmem:[#allocation8 + $0x60] sm:$0xff]
        %v426 = vld [vmem:[#allocation8 + $0x68] sm:$0xff]
        %v427 = vld [vmem:[#allocation8 + $0x70] sm:$0xff]
        %v428 = vld [vmem:[#allocation8 + $0x78] sm:$0xff]
        %429 = vmatprep.subr.mxu0 0.0
        %430 = vmatpush1.msra.mxu0 %v413
        %431 = vmatprep.subr.mxu0 0.0
        %432 = vmatpush1.msra.mxu0 %v414
        %433 = vmatprep.subr.mxu0 0.0
        %434 = vmatpush1.msra.mxu0 %v415
        %435 = vmatprep.subr.mxu0 0.0
        %436 = vmatpush1.msra.mxu0 %v416
        %437 = vmatprep.subr.mxu0 0.0
        %438 = vmatpush1.msra.mxu0 %v417
        %439 = vmatprep.subr.mxu0 0.0
        %440 = vmatpush1.msra.mxu0 %v418
        %441 = vmatprep.subr.mxu0 0.0
        %442 = vmatpush1.msra.mxu0 %v419
        %443 = vmatprep.subr.mxu0 0.0
        %444 = vmatpush1.msra.mxu0 %v420
        %445 = vmatprep.subr.mxu0 0.0
        %446 = vmatpush1.msra.mxu0 %v421
        %447 = vmatprep.subr.mxu0 0.0
        %448 = vmatpush1.msra.mxu0 %v422
        %449 = vmatprep.subr.mxu0 0.0
        %450 = vmatpush1.msra.mxu0 %v423
        %451 = vmatprep.subr.mxu0 0.0
        %452 = vmatpush1.msra.mxu0 %v424
        %453 = vmatprep.subr.mxu0 0.0
        %454 = vmatpush1.msra.mxu0 %v425
        %455 = vmatprep.subr.mxu0 0.0
        %456 = vmatpush1.msra.mxu0 %v426
        %457 = vmatprep.subr.mxu0 0.0
        %458 = vmatpush1.msra.mxu0 %v427
        %459 = vmatprep.subr.mxu0 0.0
        %460 = vmatpush1.msra.mxu0 %v428
        %461 = vmatprep.subr.mxu0 0.0
        %462 = vmatpush1.msra.mxu0 0.0
        %463 = vmatprep.subr.mxu0 0.0
        %464 = vmatpush1.msra.mxu0 0.0
        %465 = vmatprep.subr.mxu0 0.0
        %466 = vmatpush1.msra.mxu0 0.0
        %467 = vmatprep.subr.mxu0 0.0
        %468 = vmatpush1.msra.mxu0 0.0
        %469 = vmatprep.subr.mxu0 0.0
        %470 = vmatpush1.msra.mxu0 0.0
        %471 = vmatprep.subr.mxu0 0.0
        %472 = vmatpush1.msra.mxu0 0.0
        %473 = vmatprep.subr.mxu0 0.0
        %474 = vmatpush1.msra.mxu0 0.0
        %475 = vmatprep.subr.mxu0 0.0
        %476 = vmatpush1.msra.mxu0 0.0
        %477 = vmatprep.subr.mxu0 0.0
        %478 = vmatpush1.msra.mxu0 0.0
        %479 = vmatprep.subr.mxu0 0.0
        %480 = vmatpush1.msra.mxu0 0.0
        %481 = vmatprep.subr.mxu0 0.0
        %482 = vmatpush1.msra.mxu0 0.0
        %483 = vmatprep.subr.mxu0 0.0
        %484 = vmatpush1.msra.mxu0 0.0
        %485 = vmatprep.subr.mxu0 0.0
        %486 = vmatpush1.msra.mxu0 0.0
        %487 = vmatprep.subr.mxu0 0.0
        %488 = vmatpush1.msra.mxu0 0.0
        %489 = vmatprep.subr.mxu0 0.0
        %490 = vmatpush1.msra.mxu0 0.0
        %491 = vmatprep.subr.mxu0 0.0
        %492 = vmatpush1.msra.mxu0 0.0
        %493 = vmatprep.mubr.f32.mxu0 0.0
        %494 = vmatmul.mubr.f32.gmra.mrb[0].mxu0 %v411
        %v495 = vpop.f32.mrb[0].mxu0
        %v496 = vadd.f32 0.0, %v495
        %v497 = vpop.f32.mrb[0].mxu0
        %498 = vdwg.mxu0
        %v499 = vadd.f32 %v412, %v496
        %v500 = vadd.f32 %v499, %v295
        %v502 = vrot.slane %v304, 4
        %504 = vmatprep.subr.mxu0 %v308
        %505 = vmatpush1.msra.mxu0 %v307
        %506 = vmatprep.subr.mxu0 %v310
        %507 = vmatpush1.msra.mxu0 %v309
        %508 = vmatprep.subr.mxu0 %v312
        %509 = vmatpush1.msra.mxu0 %v311
        %510 = vmatprep.subr.mxu0 %v314
        %511 = vmatpush1.msra.mxu0 %v313
        %512 = vmatprep.subr.mxu0 %v316
        %513 = vmatpush1.msra.mxu0 %v315
        %514 = vmatprep.subr.mxu0 %v318
        %515 = vmatpush1.msra.mxu0 %v317
        %516 = vmatprep.subr.mxu0 %v320
        %517 = vmatpush1.msra.mxu0 %v319
        %518 = vmatprep.subr.mxu0 %v322
        %519 = vmatpush1.msra.mxu0 %v321
        %520 = vmatprep.subr.mxu0 %v324
        %521 = vmatpush1.msra.mxu0 %v323
        %522 = vmatprep.subr.mxu0 %v326
        %523 = vmatpush1.msra.mxu0 %v325
        %524 = vmatprep.subr.mxu0 %v328
        %525 = vmatpush1.msra.mxu0 %v327
        %526 = vmatprep.subr.mxu0 %v330
        %527 = vmatpush1.msra.mxu0 %v329
        %528 = vmatprep.subr.mxu0 %v332
        %529 = vmatpush1.msra.mxu0 %v331
        %530 = vmatprep.subr.mxu0 %v334
        %531 = vmatpush1.msra.mxu0 %v333
        %532 = vmatprep.subr.mxu0 %v336
        %533 = vmatpush1.msra.mxu0 %v335
        %534 = vmatprep.subr.mxu0 %v338
        %535 = vmatpush1.msra.mxu0 %v337
        %536 = vmatprep.subr.mxu0 0.0
        %537 = vmatpush1.msra.mxu0 0.0
        %538 = vmatprep.subr.mxu0 0.0
        %539 = vmatpush1.msra.mxu0 0.0
        %540 = vmatprep.subr.mxu0 0.0
        %541 = vmatpush1.msra.mxu0 0.0
        %542 = vmatprep.subr.mxu0 0.0
        %543 = vmatpush1.msra.mxu0 0.0
        %544 = vmatprep.subr.mxu0 0.0
        %545 = vmatpush1.msra.mxu0 0.0
        %546 = vmatprep.subr.mxu0 0.0
        %547 = vmatpush1.msra.mxu0 0.0
        %548 = vmatprep.subr.mxu0 0.0
        %549 = vmatpush1.msra.mxu0 0.0
        %550 = vmatprep.subr.mxu0 0.0
        %551 = vmatpush1.msra.mxu0 0.0
        %552 = vmatprep.subr.mxu0 0.0
        %553 = vmatpush1.msra.mxu0 0.0
        %554 = vmatprep.subr.mxu0 0.0
        %555 = vmatpush1.msra.mxu0 0.0
        %556 = vmatprep.subr.mxu0 0.0
        %557 = vmatpush1.msra.mxu0 0.0
        %558 = vmatprep.subr.mxu0 0.0
        %559 = vmatpush1.msra.mxu0 0.0
        %560 = vmatprep.subr.mxu0 0.0
        %561 = vmatpush1.msra.mxu0 0.0
        %562 = vmatprep.subr.mxu0 0.0
        %563 = vmatpush1.msra.mxu0 0.0
        %564 = vmatprep.subr.mxu0 0.0
        %565 = vmatpush1.msra.mxu0 0.0
        %566 = vmatprep.subr.mxu0 0.0
        %567 = vmatpush1.msra.mxu0 0.0
        %568 = vmatprep.mubr.f32.mxu0 0.0
        %569 = vmatmul.mubr.f32.gmra.mrb[0].mxu0 %v502
        %v570 = vpop.f32.mrb[0].mxu0
        %v571 = vadd.f32 0.0, %v570
        %v572 = vpop.f32.mrb[0].mxu0
        %v573 = vadd.f32 0.0, %v572
        %574 = vdwg.mxu0
        %v575 = vadd.f32 %v573, %v302
        %v576 = vtanh.pop %v575
        %v578 = vrot.slane %v571, 4
        %v580 = vadd.f32 %v304, %v578
        %581 = vmatprep.subr.mxu0 0.0
        %582 = vmatpush1.msra.mxu0 %v413
        %583 = vmatprep.subr.mxu0 0.0
        %584 = vmatpush1.msra.mxu0 %v414
        %585 = vmatprep.subr.mxu0 0.0
        %586 = vmatpush1.msra.mxu0 %v415
        %587 = vmatprep.subr.mxu0 0.0
        %588 = vmatpush1.msra.mxu0 %v416
        %589 = vmatprep.subr.mxu0 0.0
        %590 = vmatpush1.msra.mxu0 %v417
        %591 = vmatprep.subr.mxu0 0.0
        %592 = vmatpush1.msra.mxu0 %v418
        %593 = vmatprep.subr.mxu0 0.0
        %594 = vmatpush1.msra.mxu0 %v419
        %595 = vmatprep.subr.mxu0 0.0
        %596 = vmatpush1.msra.mxu0 %v420
        %597 = vmatprep.subr.mxu0 0.0
        %598 = vmatpush1.msra.mxu0 %v421
        %599 = vmatprep.subr.mxu0 0.0
        %600 = vmatpush1.msra.mxu0 %v422
        %601 = vmatprep.subr.mxu0 0.0
        %602 = vmatpush1.msra.mxu0 %v423
        %603 = vmatprep.subr.mxu0 0.0
        %604 = vmatpush1.msra.mxu0 %v424
        %605 = vmatprep.subr.mxu0 0.0
        %606 = vmatpush1.msra.mxu0 %v425
        %607 = vmatprep.subr.mxu0 0.0
        %608 = vmatpush1.msra.mxu0 %v426
        %609 = vmatprep.subr.mxu0 0.0
        %610 = vmatpush1.msra.mxu0 %v427
        %611 = vmatprep.subr.mxu0 0.0
        %612 = vmatpush1.msra.mxu0 %v428
        %613 = vmatprep.subr.mxu0 0.0
        %614 = vmatpush1.msra.mxu0 0.0
        %615 = vmatprep.subr.mxu0 0.0
        %616 = vmatpush1.msra.mxu0 0.0
        %617 = vmatprep.subr.mxu0 0.0
        %618 = vmatpush1.msra.mxu0 0.0
        %619 = vmatprep.subr.mxu0 0.0
        %620 = vmatpush1.msra.mxu0 0.0
        %621 = vmatprep.subr.mxu0 0.0
        %622 = vmatpush1.msra.mxu0 0.0
        %623 = vmatprep.subr.mxu0 0.0
        %624 = vmatpush1.msra.mxu0 0.0
        %625 = vmatprep.subr.mxu0 0.0
        %626 = vmatpush1.msra.mxu0 0.0
        %627 = vmatprep.subr.mxu0 0.0
        %628 = vmatpush1.msra.mxu0 0.0
        %629 = vmatprep.subr.mxu0 0.0
        %630 = vmatpush1.msra.mxu0 0.0
        %631 = vmatprep.subr.mxu0 0.0
        %632 = vmatpush1.msra.mxu0 0.0
        %633 = vmatprep.subr.mxu0 0.0
        %634 = vmatpush1.msra.mxu0 0.0
        %635 = vmatprep.subr.mxu0 0.0
        %636 = vmatpush1.msra.mxu0 0.0
        %637 = vmatprep.subr.mxu0 0.0
        %638 = vmatpush1.msra.mxu0 0.0
        %639 = vmatprep.subr.mxu0 0.0
        %640 = vmatpush1.msra.mxu0 0.0
        %641 = vmatprep.subr.mxu0 0.0
        %642 = vmatpush1.msra.mxu0 0.0
        %643 = vmatprep.subr.mxu0 0.0
        %644 = vmatpush1.msra.mxu0 0.0
        %645 = vmatprep.mubr.f32.mxu0 0.0
        %646 = vmatmul.mubr.f32.gmra.mrb[0].mxu0 %v576
        %v647 = vpop.f32.mrb[0].mxu0
        %v648 = vadd.f32 0.0, %v647
        %v649 = vpop.f32.mrb[0].mxu0
        %650 = vdwg.mxu0
        %v652 = vrot.slane %v648, 4
        %v654 = vadd.f32 %v580, %v652
        %v655 = vadd.f32 %v654, %v295
        %656 = vst [vmem:[%s282 + $0x8] sm:$0xf] %v500
        %657 = vst [vmem:[%s282 + $0x8] sm:$0xf0] %v655
        %v658 = vld [vmem:[#allocation6] sm:$0xff]
        %v659 = vld [vmem:[#allocation6 + $0x8] sm:$0xff]
        %v660 = vld [vmem:[#allocation6 + $0x10] sm:$0xff]
        %v661 = vld [vmem:[#allocation6 + $0x18] sm:$0xff]
        %v662 = vld [vmem:[#allocation6 + $0x20] sm:$0xff]
        %v663 = vld [vmem:[#allocation6 + $0x28] sm:$0xff]
        %v664 = vld [vmem:[#allocation6 + $0x30] sm:$0xff]
        %v665 = vld [vmem:[#allocation6 + $0x38] sm:$0xff]
        %v666 = vld [vmem:[#allocation6 + $0x40] sm:$0xff]
        %v667 = vld [vmem:[#allocation6 + $0x48] sm:$0xff]
        %v668 = vld [vmem:[#allocation6 + $0x50] sm:$0xff]
        %v669 = vld [vmem:[#allocation6 + $0x58] sm:$0xff]
        %v670 = vld [vmem:[#allocation6 + $0x60] sm:$0xff]
        %v671 = vld [vmem:[#allocation6 + $0x68] sm:$0xff]
        %v672 = vld [vmem:[#allocation6 + $0x70] sm:$0xff]
        %v673 = vld [vmem:[#allocation6 + $0x78] sm:$0xff]
        %v674 = vld [vmem:[#allocation6 + $0x80] sm:$0xff]
        %v675 = vld [vmem:[#allocation6 + $0x88] sm:$0xff]
        %v676 = vld [vmem:[#allocation6 + $0x90] sm:$0xff]
        %v677 = vld [vmem:[#allocation6 + $0x98] sm:$0xff]
        %v678 = vld [vmem:[#allocation6 + $0xa0] sm:$0xff]
        %v679 = vld [vmem:[#allocation6 + $0xa8] sm:$0xff]
        %v680 = vld [vmem:[#allocation6 + $0xb0] sm:$0xff]
        %v681 = vld [vmem:[#allocation6 + $0xb8] sm:$0xff]
        %v682 = vld [vmem:[#allocation6 + $0xc0] sm:$0xff]
        %v683 = vld [vmem:[#allocation6 + $0xc8] sm:$0xff]
        %v684 = vld [vmem:[#allocation6 + $0xd0] sm:$0xff]
        %v685 = vld [vmem:[#allocation6 + $0xd8] sm:$0xff]
        %v686 = vld [vmem:[#allocation6 + $0xe0] sm:$0xff]
        %v687 = vld [vmem:[#allocation6 + $0xe8] sm:$0xff]
        %v688 = vld [vmem:[#allocation6 + $0xf0] sm:$0xff]
        %v689 = vld [vmem:[#allocation6 + $0xf8] sm:$0xff]
        %690 = vmatprep.subr.mxu0 %v659
        %691 = vmatpush1.msra.mxu0 %v658
        %692 = vmatprep.subr.mxu0 %v661
        %693 = vmatpush1.msra.mxu0 %v660
        %694 = vmatprep.subr.mxu0 %v663
        %695 = vmatpush1.msra.mxu0 %v662
        %696 = vmatprep.subr.mxu0 %v665
        %697 = vmatpush1.msra.mxu0 %v664
        %698 = vmatprep.subr.mxu0 %v667
        %699 = vmatpush1.msra.mxu0 %v666
        %700 = vmatprep.subr.mxu0 %v669
        %701 = vmatpush1.msra.mxu0 %v668
        %702 = vmatprep.subr.mxu0 %v671
        %703 = vmatpush1.msra.mxu0 %v670
        %704 = vmatprep.subr.mxu0 %v673
        %705 = vmatpush1.msra.mxu0 %v672
        %706 = vmatprep.subr.mxu0 %v675
        %707 = vmatpush1.msra.mxu0 %v674
        %708 = vmatprep.subr.mxu0 %v677
        %709 = vmatpush1.msra.mxu0 %v676
        %710 = vmatprep.subr.mxu0 %v679
        %711 = vmatpush1.msra.mxu0 %v678
        %712 = vmatprep.subr.mxu0 %v681
        %713 = vmatpush1.msra.mxu0 %v680
        %714 = vmatprep.subr.mxu0 %v683
        %715 = vmatpush1.msra.mxu0 %v682
        %716 = vmatprep.subr.mxu0 %v685
        %717 = vmatpush1.msra.mxu0 %v684
        %718 = vmatprep.subr.mxu0 %v687
        %719 = vmatpush1.msra.mxu0 %v686
        %720 = vmatprep.subr.mxu0 %v689
        %721 = vmatpush1.msra.mxu0 %v688
        %722 = vmatprep.subr.mxu0 0.0
        %723 = vmatpush1.msra.mxu0 0.0
        %724 = vmatprep.subr.mxu0 0.0
        %725 = vmatpush1.msra.mxu0 0.0
        %726 = vmatprep.subr.mxu0 0.0
        %727 = vmatpush1.msra.mxu0 0.0
        %728 = vmatprep.subr.mxu0 0.0
        %729 = vmatpush1.msra.mxu0 0.0
        %730 = vmatprep.subr.mxu0 0.0
        %731 = vmatpush1.msra.mxu0 0.0
        %732 = vmatprep.subr.mxu0 0.0
        %733 = vmatpush1.msra.mxu0 0.0
        %734 = vmatprep.subr.mxu0 0.0
        %735 = vmatpush1.msra.mxu0 0.0
        %736 = vmatprep.subr.mxu0 0.0
        %737 = vmatpush1.msra.mxu0 0.0
        %738 = vmatprep.subr.mxu0 0.0
        %739 = vmatpush1.msra.mxu0 0.0
        %740 = vmatprep.subr.mxu0 0.0
        %741 = vmatpush1.msra.mxu0 0.0
        %742 = vmatprep.subr.mxu0 0.0
        %743 = vmatpush1.msra.mxu0 0.0
        %744 = vmatprep.subr.mxu0 0.0
        %745 = vmatpush1.msra.mxu0 0.0
        %746 = vmatprep.subr.mxu0 0.0
        %747 = vmatpush1.msra.mxu0 0.0
        %748 = vmatprep.subr.mxu0 0.0
        %749 = vmatpush1.msra.mxu0 0.0
        %750 = vmatprep.subr.mxu0 0.0
        %751 = vmatpush1.msra.mxu0 0.0
        %752 = vmatprep.subr.mxu0 0.0
        %753 = vmatpush1.msra.mxu0 0.0
        %754 = vmatprep.mubr.f32.mxu0 0.0
        %755 = vmatmul.mubr.f32.gmra.mrb[0].mxu0 %v500
        %v756 = vpop.f32.mrb[0].mxu0
        %v757 = vadd.f32 0.0, %v756
        %v758 = vpop.f32.mrb[0].mxu0
        %v759 = vadd.f32 0.0, %v758
        %760 = vdwg.mxu0
        %v761 = vadd.f32 %v759, %v302
        %v762 = vtanh.pop %v761
        %v763 = vadd.f32 %v500, %v757
        %v764 = vld [vmem:[#allocation8] sm:$0xff]
        %v765 = vld [vmem:[#allocation8 + $0x8] sm:$0xff]
        %v766 = vld [vmem:[#allocation8 + $0x10] sm:$0xff]
        %v767 = vld [vmem:[#allocation8 + $0x18] sm:$0xff]
        %v768 = vld [vmem:[#allocation8 + $0x20] sm:$0xff]
        %v769 = vld [vmem:[#allocation8 + $0x28] sm:$0xff]
        %v770 = vld [vmem:[#allocation8 + $0x30] sm:$0xff]
        %v771 = vld [vmem:[#allocation8 + $0x38] sm:$0xff]
        %v772 = vld [vmem:[#allocation8 + $0x40] sm:$0xff]
        %v773 = vld [vmem:[#allocation8 + $0x48] sm:$0xff]
        %v774 = vld [vmem:[#allocation8 + $0x50] sm:$0xff]
        %v775 = vld [vmem:[#allocation8 + $0x58] sm:$0xff]
        %v776 = vld [vmem:[#allocation8 + $0x60] sm:$0xff]
        %v777 = vld [vmem:[#allocation8 + $0x68] sm:$0xff]
        %v778 = vld [vmem:[#allocation8 + $0x70] sm:$0xff]
        %v779 = vld [vmem:[#allocation8 + $0x78] sm:$0xff]
        %780 = vmatprep.subr.mxu0 0.0
        %781 = vmatpush1.msra.mxu0 %v764
        %782 = vmatprep.subr.mxu0 0.0
        %783 = vmatpush1.msra.mxu0 %v765
        %784 = vmatprep.subr.mxu0 0.0
        %785 = vmatpush1.msra.mxu0 %v766
        %786 = vmatprep.subr.mxu0 0.0
        %787 = vmatpush1.msra.mxu0 %v767
        %788 = vmatprep.subr.mxu0 0.0
        %789 = vmatpush1.msra.mxu0 %v768
        %790 = vmatprep.subr.mxu0 0.0
        %791 = vmatpush1.msra.mxu0 %v769
        %792 = vmatprep.subr.mxu0 0.0
        %793 = vmatpush1.msra.mxu0 %v770
        %794 = vmatprep.subr.mxu0 0.0
        %795 = vmatpush1.msra.mxu0 %v771
        %796 = vmatprep.subr.mxu0 0.0
        %797 = vmatpush1.msra.mxu0 %v772
        %798 = vmatprep.subr.mxu0 0.0
        %799 = vmatpush1.msra.mxu0 %v773
        %800 = vmatprep.subr.mxu0 0.0
        %801 = vmatpush1.msra.mxu0 %v774
        %802 = vmatprep.subr.mxu0 0.0
        %803 = vmatpush1.msra.mxu0 %v775
        %804 = vmatprep.subr.mxu0 0.0
        %805 = vmatpush1.msra.mxu0 %v776
        %806 = vmatprep.subr.mxu0 0.0
        %807 = vmatpush1.msra.mxu0 %v777
        %808 = vmatprep.subr.mxu0 0.0
        %809 = vmatpush1.msra.mxu0 %v778
        %810 = vmatprep.subr.mxu0 0.0
        %811 = vmatpush1.msra.mxu0 %v779
        %812 = vmatprep.subr.mxu0 0.0
        %813 = vmatpush1.msra.mxu0 0.0
        %814 = vmatprep.subr.mxu0 0.0
        %815 = vmatpush1.msra.mxu0 0.0
        %816 = vmatprep.subr.mxu0 0.0
        %817 = vmatpush1.msra.mxu0 0.0
        %818 = vmatprep.subr.mxu0 0.0
        %819 = vmatpush1.msra.mxu0 0.0
        %820 = vmatprep.subr.mxu0 0.0
        %821 = vmatpush1.msra.mxu0 0.0
        %822 = vmatprep.subr.mxu0 0.0
        %823 = vmatpush1.msra.mxu0 0.0
        %824 = vmatprep.subr.mxu0 0.0
        %825 = vmatpush1.msra.mxu0 0.0
        %826 = vmatprep.subr.mxu0 0.0
        %827 = vmatpush1.msra.mxu0 0.0
        %828 = vmatprep.subr.mxu0 0.0
        %829 = vmatpush1.msra.mxu0 0.0
        %830 = vmatprep.subr.mxu0 0.0
        %831 = vmatpush1.msra.mxu0 0.0
        %832 = vmatprep.subr.mxu0 0.0
        %833 = vmatpush1.msra.mxu0 0.0
        %834 = vmatprep.subr.mxu0 0.0
        %835 = vmatpush1.msra.mxu0 0.0
        %836 = vmatprep.subr.mxu0 0.0
        %837 = vmatpush1.msra.mxu0 0.0
        %838 = vmatprep.subr.mxu0 0.0
        %839 = vmatpush1.msra.mxu0 0.0
        %840 = vmatprep.subr.mxu0 0.0
        %841 = vmatpush1.msra.mxu0 0.0
        %842 = vmatprep.subr.mxu0 0.0
        %843 = vmatpush1.msra.mxu0 0.0
        %844 = vmatprep.mubr.f32.mxu0 0.0
        %845 = vmatmul.mubr.f32.gmra.mrb[0].mxu0 %v762
        %v846 = vpop.f32.mrb[0].mxu0
        %v847 = vadd.f32 0.0, %v846
        %v848 = vpop.f32.mrb[0].mxu0
        %849 = vdwg.mxu0
        %v850 = vadd.f32 %v763, %v847
        %v851 = vadd.f32 %v850, %v295
        %v853 = vrot.slane %v655, 4
        %855 = vmatprep.subr.mxu0 %v659
        %856 = vmatpush1.msra.mxu0 %v658
        %857 = vmatprep.subr.mxu0 %v661
        %858 = vmatpush1.msra.mxu0 %v660
        %859 = vmatprep.subr.mxu0 %v663
        %860 = vmatpush1.msra.mxu0 %v662
        %861 = vmatprep.subr.mxu0 %v665
        %862 = vmatpush1.msra.mxu0 %v664
        %863 = vmatprep.subr.mxu0 %v667
        %864 = vmatpush1.msra.mxu0 %v666
        %865 = vmatprep.subr.mxu0 %v669
        %866 = vmatpush1.msra.mxu0 %v668
        %867 = vmatprep.subr.mxu0 %v671
        %868 = vmatpush1.msra.mxu0 %v670
        %869 = vmatprep.subr.mxu0 %v673
        %870 = vmatpush1.msra.mxu0 %v672
        %871 = vmatprep.subr.mxu0 %v675
        %872 = vmatpush1.msra.mxu0 %v674
        %873 = vmatprep.subr.mxu0 %v677
        %874 = vmatpush1.msra.mxu0 %v676
        %875 = vmatprep.subr.mxu0 %v679
        %876 = vmatpush1.msra.mxu0 %v678
        %877 = vmatprep.subr.mxu0 %v681
        %878 = vmatpush1.msra.mxu0 %v680
        %879 = vmatprep.subr.mxu0 %v683
        %880 = vmatpush1.msra.mxu0 %v682
        %881 = vmatprep.subr.mxu0 %v685
        %882 = vmatpush1.msra.mxu0 %v684
        %883 = vmatprep.subr.mxu0 %v687
        %884 = vmatpush1.msra.mxu0 %v686
        %885 = vmatprep.subr.mxu0 %v689
        %886 = vmatpush1.msra.mxu0 %v688
        %887 = vmatprep.subr.mxu0 0.0
        %888 = vmatpush1.msra.mxu0 0.0
        %889 = vmatprep.subr.mxu0 0.0
        %890 = vmatpush1.msra.mxu0 0.0
        %891 = vmatprep.subr.mxu0 0.0
        %892 = vmatpush1.msra.mxu0 0.0
        %893 = vmatprep.subr.mxu0 0.0
        %894 = vmatpush1.msra.mxu0 0.0
        %895 = vmatprep.subr.mxu0 0.0
        %896 = vmatpush1.msra.mxu0 0.0
        %897 = vmatprep.subr.mxu0 0.0
        %898 = vmatpush1.msra.mxu0 0.0
        %899 = vmatprep.subr.mxu0 0.0
        %900 = vmatpush1.msra.mxu0 0.0
        %901 = vmatprep.subr.mxu0 0.0
        %902 = vmatpush1.msra.mxu0 0.0
        %903 = vmatprep.subr.mxu0 0.0
        %904 = vmatpush1.msra.mxu0 0.0
        %905 = vmatprep.subr.mxu0 0.0
        %906 = vmatpush1.msra.mxu0 0.0
        %907 = vmatprep.subr.mxu0 0.0
        %908 = vmatpush1.msra.mxu0 0.0
        %909 = vmatprep.subr.mxu0 0.0
        %910 = vmatpush1.msra.mxu0 0.0
        %911 = vmatprep.subr.mxu0 0.0
        %912 = vmatpush1.msra.mxu0 0.0
        %913 = vmatprep.subr.mxu0 0.0
        %914 = vmatpush1.msra.mxu0 0.0
        %915 = vmatprep.subr.mxu0 0.0
        %916 = vmatpush1.msra.mxu0 0.0
        %917 = vmatprep.subr.mxu0 0.0
        %918 = vmatpush1.msra.mxu0 0.0
        %919 = vmatprep.mubr.f32.mxu0 0.0
        %920 = vmatmul.mubr.f32.gmra.mrb[0].mxu0 %v853
        %v921 = vpop.f32.mrb[0].mxu0
        %v922 = vadd.f32 0.0, %v921
        %v923 = vpop.f32.mrb[0].mxu0
        %v924 = vadd.f32 0.0, %v923
        %925 = vdwg.mxu0
        %v926 = vadd.f32 %v924, %v302
        %v927 = vtanh.pop %v926
        %v929 = vrot.slane %v922, 4
        %v931 = vadd.f32 %v655, %v929
        %932 = vmatprep.subr.mxu0 0.0
        %933 = vmatpush1.msra.mxu0 %v764
        %934 = vmatprep.subr.mxu0 0.0
        %935 = vmatpush1.msra.mxu0 %v765
        %936 = vmatprep.subr.mxu0 0.0
        %937 = vmatpush1.msra.mxu0 %v766
        %938 = vmatprep.subr.mxu0 0.0
        %939 = vmatpush1.msra.mxu0 %v767
        %940 = vmatprep.subr.mxu0 0.0
        %941 = vmatpush1.msra.mxu0 %v768
        %942 = vmatprep.subr.mxu0 0.0
        %943 = vmatpush1.msra.mxu0 %v769
        %944 = vmatprep.subr.mxu0 0.0
        %945 = vmatpush1.msra.mxu0 %v770
        %946 = vmatprep.subr.mxu0 0.0
        %947 = vmatpush1.msra.mxu0 %v771
        %948 = vmatprep.subr.mxu0 0.0
        %949 = vmatpush1.msra.mxu0 %v772
        %950 = vmatprep.subr.mxu0 0.0
        %951 = vmatpush1.msra.mxu0 %v773
        %952 = vmatprep.subr.mxu0 0.0
        %953 = vmatpush1.msra.mxu0 %v774
        %954 = vmatprep.subr.mxu0 0.0
        %955 = vmatpush1.msra.mxu0 %v775
        %956 = vmatprep.subr.mxu0 0.0
        %957 = vmatpush1.msra.mxu0 %v776
        %958 = vmatprep.subr.mxu0 0.0
        %959 = vmatpush1.msra.mxu0 %v777
        %960 = vmatprep.subr.mxu0 0.0
        %961 = vmatpush1.msra.mxu0 %v778
        %962 = vmatprep.subr.mxu0 0.0
        %963 = vmatpush1.msra.mxu0 %v779
        %964 = vmatprep.subr.mxu0 0.0
        %965 = vmatpush1.msra.mxu0 0.0
        %966 = vmatprep.subr.mxu0 0.0
        %967 = vmatpush1.msra.mxu0 0.0
        %968 = vmatprep.subr.mxu0 0.0
        %969 = vmatpush1.msra.mxu0 0.0
        %970 = vmatprep.subr.mxu0 0.0
        %971 = vmatpush1.msra.mxu0 0.0
        %972 = vmatprep.subr.mxu0 0.0
        %973 = vmatpush1.msra.mxu0 0.0
        %974 = vmatprep.subr.mxu0 0.0
        %975 = vmatpush1.msra.mxu0 0.0
        %976 = vmatprep.subr.mxu0 0.0
        %977 = vmatpush1.msra.mxu0 0.0
        %978 = vmatprep.subr.mxu0 0.0
        %979 = vmatpush1.msra.mxu0 0.0
        %980 = vmatprep.subr.mxu0 0.0
        %981 = vmatpush1.msra.mxu0 0.0
        %982 = vmatprep.subr.mxu0 0.0
        %983 = vmatpush1.msra.mxu0 0.0
        %984 = vmatprep.subr.mxu0 0.0
        %985 = vmatpush1.msra.mxu0 0.0
        %986 = vmatprep.subr.mxu0 0.0
        %987 = vmatpush1.msra.mxu0 0.0
        %988 = vmatprep.subr.mxu0 0.0
        %989 = vmatpush1.msra.mxu0 0.0
        %990 = vmatprep.subr.mxu0 0.0
        %991 = vmatpush1.msra.mxu0 0.0
        %992 = vmatprep.subr.mxu0 0.0
        %993 = vmatpush1.msra.mxu0 0.0
        %994 = vmatprep.subr.mxu0 0.0
        %995 = vmatpush1.msra.mxu0 0.0
        %996 = vmatprep.mubr.f32.mxu0 0.0
        %997 = vmatmul.mubr.f32.gmra.mrb[0].mxu0 %v927
        %v998 = vpop.f32.mrb[0].mxu0
        %v999 = vadd.f32 0.0, %v998
        %v1000 = vpop.f32.mrb[0].mxu0
        %1001 = vdwg.mxu0
        %v1003 = vrot.slane %v999, 4
        %v1005 = vadd.f32 %v931, %v1003
        %v1006 = vadd.f32 %v1005, %v295
        %1007 = vst [vmem:[%s282 + $0x10] sm:$0xf] %v851
        %1008 = vst [vmem:[%s282 + $0x10] sm:$0xf0] %v1006
        %v1009 = vld [vmem:[#allocation6] sm:$0xff]
        %v1010 = vld [vmem:[#allocation6 + $0x8] sm:$0xff]
        %v1011 = vld [vmem:[#allocation6 + $0x10] sm:$0xff]
        %v1012 = vld [vmem:[#allocation6 + $0x18] sm:$0xff]
        %v1013 = vld [vmem:[#allocation6 + $0x20] sm:$0xff]
        %v1014 = vld [vmem:[#allocation6 + $0x28] sm:$0xff]
        %v1015 = vld [vmem:[#allocation6 + $0x30] sm:$0xff]
        %v1016 = vld [vmem:[#allocation6 + $0x38] sm:$0xff]
        %v1017 = vld [vmem:[#allocation6 + $0x40] sm:$0xff]
        %v1018 = vld [vmem:[#allocation6 + $0x48] sm:$0xff]
        %v1019 = vld [vmem:[#allocation6 + $0x50] sm:$0xff]
        %v1020 = vld [vmem:[#allocation6 + $0x58] sm:$0xff]
        %v1021 = vld [vmem:[#allocation6 + $0x60] sm:$0xff]
        %v1022 = vld [vmem:[#allocation6 + $0x68] sm:$0xff]
        %v1023 = vld [vmem:[#allocation6 + $0x70] sm:$0xff]
        %v1024 = vld [vmem:[#allocation6 + $0x78] sm:$0xff]
        %v1025 = vld [vmem:[#allocation6 + $0x80] sm:$0xff]
        %v1026 = vld [vmem:[#allocation6 + $0x88] sm:$0xff]
        %v1027 = vld [vmem:[#allocation6 + $0x90] sm:$0xff]
        %v1028 = vld [vmem:[#allocation6 + $0x98] sm:$0xff]
        %v1029 = vld [vmem:[#allocation6 + $0xa0] sm:$0xff]
        %v1030 = vld [vmem:[#allocation6 + $0xa8] sm:$0xff]
        %v1031 = vld [vmem:[#allocation6 + $0xb0] sm:$0xff]
        %v1032 = vld [vmem:[#allocation6 + $0xb8] sm:$0xff]
        %v1033 = vld [vmem:[#allocation6 + $0xc0] sm:$0xff]
        %v1034 = vld [vmem:[#allocation6 + $0xc8] sm:$0xff]
        %v1035 = vld [vmem:[#allocation6 + $0xd0] sm:$0xff]
        %v1036 = vld [vmem:[#allocation6 + $0xd8] sm:$0xff]
        %v1037 = vld [vmem:[#allocation6 + $0xe0] sm:$0xff]
        %v1038 = vld [vmem:[#allocation6 + $0xe8] sm:$0xff]
        %v1039 = vld [vmem:[#allocation6 + $0xf0] sm:$0xff]
        %v1040 = vld [vmem:[#allocation6 + $0xf8] sm:$0xff]
        %1041 = vmatprep.subr.mxu0 %v1010
        %1042 = vmatpush1.msra.mxu0 %v1009
        %1043 = vmatprep.subr.mxu0 %v1012
        %1044 = vmatpush1.msra.mxu0 %v1011
        %1045 = vmatprep.subr.mxu0 %v1014
        %1046 = vmatpush1.msra.mxu0 %v1013
        %1047 = vmatprep.subr.mxu0 %v1016
        %1048 = vmatpush1.msra.mxu0 %v1015
        %1049 = vmatprep.subr.mxu0 %v1018
        %1050 = vmatpush1.msra.mxu0 %v1017
        %1051 = vmatprep.subr.mxu0 %v1020
        %1052 = vmatpush1.msra.mxu0 %v1019
        %1053 = vmatprep.subr.mxu0 %v1022
        %1054 = vmatpush1.msra.mxu0 %v1021
        %1055 = vmatprep.subr.mxu0 %v1024
        %1056 = vmatpush1.msra.mxu0 %v1023
        %1057 = vmatprep.subr.mxu0 %v1026
        %1058 = vmatpush1.msra.mxu0 %v1025
        %1059 = vmatprep.subr.mxu0 %v1028
        %1060 = vmatpush1.msra.mxu0 %v1027
        %1061 = vmatprep.subr.mxu0 %v1030
        %1062 = vmatpush1.msra.mxu0 %v1029
        %1063 = vmatprep.subr.mxu0 %v1032
        %1064 = vmatpush1.msra.mxu0 %v1031
        %1065 = vmatprep.subr.mxu0 %v1034
        %1066 = vmatpush1.msra.mxu0 %v1033
        %1067 = vmatprep.subr.mxu0 %v1036
        %1068 = vmatpush1.msra.mxu0 %v1035
        %1069 = vmatprep.subr.mxu0 %v1038
        %1070 = vmatpush1.msra.mxu0 %v1037
        %1071 = vmatprep.subr.mxu0 %v1040
        %1072 = vmatpush1.msra.mxu0 %v1039
        %1073 = vmatprep.subr.mxu0 0.0
        %1074 = vmatpush1.msra.mxu0 0.0
        %1075 = vmatprep.subr.mxu0 0.0
        %1076 = vmatpush1.msra.mxu0 0.0
        %1077 = vmatprep.subr.mxu0 0.0
        %1078 = vmatpush1.msra.mxu0 0.0
        %1079 = vmatprep.subr.mxu0 0.0
        %1080 = vmatpush1.msra.mxu0 0.0
        %1081 = vmatprep.subr.mxu0 0.0
        %1082 = vmatpush1.msra.mxu0 0.0
        %1083 = vmatprep.subr.mxu0 0.0
        %1084 = vmatpush1.msra.mxu0 0.0
        %1085 = vmatprep.subr.mxu0 0.0
        %1086 = vmatpush1.msra.mxu0 0.0
        %1087 = vmatprep.subr.mxu0 0.0
        %1088 = vmatpush1.msra.mxu0 0.0
        %1089 = vmatprep.subr.mxu0 0.0
        %1090 = vmatpush1.msra.mxu0 0.0
        %1091 = vmatprep.subr.mxu0 0.0
        %1092 = vmatpush1.msra.mxu0 0.0
        %1093 = vmatprep.subr.mxu0 0.0
        %1094 = vmatpush1.msra.mxu0 0.0
        %1095 = vmatprep.subr.mxu0 0.0
        %1096 = vmatpush1.msra.mxu0 0.0
        %1097 = vmatprep.subr.mxu0 0.0
        %1098 = vmatpush1.msra.mxu0 0.0
        %1099 = vmatprep.subr.mxu0 0.0
        %1100 = vmatpush1.msra.mxu0 0.0
        %1101 = vmatprep.subr.mxu0 0.0
        %1102 = vmatpush1.msra.mxu0 0.0
        %1103 = vmatprep.subr.mxu0 0.0
        %1104 = vmatpush1.msra.mxu0 0.0
        %1105 = vmatprep.mubr.f32.mxu0 0.0
        %1106 = vmatmul.mubr.f32.gmra.mrb[0].mxu0 %v851
        %v1107 = vpop.f32.mrb[0].mxu0
        %v1108 = vadd.f32 0.0, %v1107
        %v1109 = vpop.f32.mrb[0].mxu0
        %v1110 = vadd.f32 0.0, %v1109
        %1111 = vdwg.mxu0
        %v1112 = vadd.f32 %v1110, %v302
        %v1113 = vtanh.pop %v1112
        %v1114 = vadd.f32 %v851, %v1108
        %v1115 = vld [vmem:[#allocation8] sm:$0xff]
        %v1116 = vld [vmem:[#allocation8 + $0x8] sm:$0xff]
        %v1117 = vld [vmem:[#allocation8 + $0x10] sm:$0xff]
        %v1118 = vld [vmem:[#allocation8 + $0x18] sm:$0xff]
        %v1119 = vld [vmem:[#allocation8 + $0x20] sm:$0xff]
        %v1120 = vld [vmem:[#allocation8 + $0x28] sm:$0xff]
        %v1121 = vld [vmem:[#allocation8 + $0x30] sm:$0xff]
        %v1122 = vld [vmem:[#allocation8 + $0x38] sm:$0xff]
        %v1123 = vld [vmem:[#allocation8 + $0x40] sm:$0xff]
        %v1124 = vld [vmem:[#allocation8 + $0x48] sm:$0xff]
        %v1125 = vld [vmem:[#allocation8 + $0x50] sm:$0xff]
        %v1126 = vld [vmem:[#allocation8 + $0x58] sm:$0xff]
        %v1127 = vld [vmem:[#allocation8 + $0x60] sm:$0xff]
        %v1128 = vld [vmem:[#allocation8 + $0x68] sm:$0xff]
        %v1129 = vld [vmem:[#allocation8 + $0x70] sm:$0xff]
        %v1130 = vld [vmem:[#allocation8 + $0x78] sm:$0xff]
        %1131 = vmatprep.subr.mxu0 0.0
        %1132 = vmatpush1.msra.mxu0 %v1115
        %1133 = vmatprep.subr.mxu0 0.0
        %1134 = vmatpush1.msra.mxu0 %v1116
        %1135 = vmatprep.subr.mxu0 0.0
        %1136 = vmatpush1.msra.mxu0 %v1117
        %1137 = vmatprep.subr.mxu0 0.0
        %1138 = vmatpush1.msra.mxu0 %v1118
        %1139 = vmatprep.subr.mxu0 0.0
        %1140 = vmatpush1.msra.mxu0 %v1119
        %1141 = vmatprep.subr.mxu0 0.0
        %1142 = vmatpush1.msra.mxu0 %v1120
        %1143 = vmatprep.subr.mxu0 0.0
        %1144 = vmatpush1.msra.mxu0 %v1121
        %1145 = vmatprep.subr.mxu0 0.0
        %1146 = vmatpush1.msra.mxu0 %v1122
        %1147 = vmatprep.subr.mxu0 0.0
        %1148 = vmatpush1.msra.mxu0 %v1123
        %1149 = vmatprep.subr.mxu0 0.0
        %1150 = vmatpush1.msra.mxu0 %v1124
        %1151 = vmatprep.subr.mxu0 0.0
        %1152 = vmatpush1.msra.mxu0 %v1125
        %1153 = vmatprep.subr.mxu0 0.0
        %1154 = vmatpush1.msra.mxu0 %v1126
        %1155 = vmatprep.subr.mxu0 0.0
        %1156 = vmatpush1.msra.mxu0 %v1127
        %1157 = vmatprep.subr.mxu0 0.0
        %1158 = vmatpush1.msra.mxu0 %v1128
        %1159 = vmatprep.subr.mxu0 0.0
        %1160 = vmatpush1.msra.mxu0 %v1129
        %1161 = vmatprep.subr.mxu0 0.0
        %1162 = vmatpush1.msra.mxu0 %v1130
        %1163 = vmatprep.subr.mxu0 0.0
        %1164 = vmatpush1.msra.mxu0 0.0
        %1165 = vmatprep.subr.mxu0 0.0
        %1166 = vmatpush1.msra.mxu0 0.0
        %1167 = vmatprep.subr.mxu0 0.0
        %1168 = vmatpush1.msra.mxu0 0.0
        %1169 = vmatprep.subr.mxu0 0.0
        %1170 = vmatpush1.msra.mxu0 0.0
        %1171 = vmatprep.subr.mxu0 0.0
        %1172 = vmatpush1.msra.mxu0 0.0
        %1173 = vmatprep.subr.mxu0 0.0
        %1174 = vmatpush1.msra.mxu0 0.0
        %1175 = vmatprep.subr.mxu0 0.0
        %1176 = vmatpush1.msra.mxu0 0.0
        %1177 = vmatprep.subr.mxu0 0.0
        %1178 = vmatpush1.msra.mxu0 0.0
        %1179 = vmatprep.subr.mxu0 0.0
        %1180 = vmatpush1.msra.mxu0 0.0
        %1181 = vmatprep.subr.mxu0 0.0
        %1182 = vmatpush1.msra.mxu0 0.0
        %1183 = vmatprep.subr.mxu0 0.0
        %1184 = vmatpush1.msra.mxu0 0.0
        %1185 = vmatprep.subr.mxu0 0.0
        %1186 = vmatpush1.msra.mxu0 0.0
        %1187 = vmatprep.subr.mxu0 0.0
        %1188 = vmatpush1.msra.mxu0 0.0
        %1189 = vmatprep.subr.mxu0 0.0
        %1190 = vmatpush1.msra.mxu0 0.0
        %1191 = vmatprep.subr.mxu0 0.0
        %1192 = vmatpush1.msra.mxu0 0.0
        %1193 = vmatprep.subr.mxu0 0.0
        %1194 = vmatpush1.msra.mxu0 0.0
        %1195 = vmatprep.mubr.f32.mxu0 0.0
        %1196 = vmatmul.mubr.f32.gmra.mrb[0].mxu0 %v1113
        %v1197 = vpop.f32.mrb[0].mxu0
        %v1198 = vadd.f32 0.0, %v1197
        %v1199 = vpop.f32.mrb[0].mxu0
        %1200 = vdwg.mxu0
        %v1201 = vadd.f32 %v1114, %v1198
        %v1202 = vadd.f32 %v1201, %v295
        %v1204 = vrot.slane %v1006, 4
        %1206 = vmatprep.subr.mxu0 %v1010
        %1207 = vmatpush1.msra.mxu0 %v1009
        %1208 = vmatprep.subr.mxu0 %v1012
        %1209 = vmatpush1.msra.mxu0 %v1011
        %1210 = vmatprep.subr.mxu0 %v1014
        %1211 = vmatpush1.msra.mxu0 %v1013
        %1212 = vmatprep.subr.mxu0 %v1016
        %1213 = vmatpush1.msra.mxu0 %v1015
        %1214 = vmatprep.subr.mxu0 %v1018
        %1215 = vmatpush1.msra.mxu0 %v1017
        %1216 = vmatprep.subr.mxu0 %v1020
        %1217 = vmatpush1.msra.mxu0 %v1019
        %1218 = vmatprep.subr.mxu0 %v1022
        %1219 = vmatpush1.msra.mxu0 %v1021
        %1220 = vmatprep.subr.mxu0 %v1024
        %1221 = vmatpush1.msra.mxu0 %v1023
        %1222 = vmatprep.subr.mxu0 %v1026
        %1223 = vmatpush1.msra.mxu0 %v1025
        %1224 = vmatprep.subr.mxu0 %v1028
        %1225 = vmatpush1.msra.mxu0 %v1027
        %1226 = vmatprep.subr.mxu0 %v1030
        %1227 = vmatpush1.msra.mxu0 %v1029
        %1228 = vmatprep.subr.mxu0 %v1032
        %1229 = vmatpush1.msra.mxu0 %v1031
        %1230 = vmatprep.subr.mxu0 %v1034
        %1231 = vmatpush1.msra.mxu0 %v1033
        %1232 = vmatprep.subr.mxu0 %v1036
        %1233 = vmatpush1.msra.mxu0 %v1035
        %1234 = vmatprep.subr.mxu0 %v1038
        %1235 = vmatpush1.msra.mxu0 %v1037
        %1236 = vmatprep.subr.mxu0 %v1040
        %1237 = vmatpush1.msra.mxu0 %v1039
        %1238 = vmatprep.subr.mxu0 0.0
        %1239 = vmatpush1.msra.mxu0 0.0
        %1240 = vmatprep.subr.mxu0 0.0
        %1241 = vmatpush1.msra.mxu0 0.0
        %1242 = vmatprep.subr.mxu0 0.0
        %1243 = vmatpush1.msra.mxu0 0.0
        %1244 = vmatprep.subr.mxu0 0.0
        %1245 = vmatpush1.msra.mxu0 0.0
        %1246 = vmatprep.subr.mxu0 0.0
        %1247 = vmatpush1.msra.mxu0 0.0
        %1248 = vmatprep.subr.mxu0 0.0
        %1249 = vmatpush1.msra.mxu0 0.0
        %1250 = vmatprep.subr.mxu0 0.0
        %1251 = vmatpush1.msra.mxu0 0.0
        %1252 = vmatprep.subr.mxu0 0.0
        %1253 = vmatpush1.msra.mxu0 0.0
        %1254 = vmatprep.subr.mxu0 0.0
        %1255 = vmatpush1.msra.mxu0 0.0
        %1256 = vmatprep.subr.mxu0 0.0
        %1257 = vmatpush1.msra.mxu0 0.0
        %1258 = vmatprep.subr.mxu0 0.0
        %1259 = vmatpush1.msra.mxu0 0.0
        %1260 = vmatprep.subr.mxu0 0.0
        %1261 = vmatpush1.msra.mxu0 0.0
        %1262 = vmatprep.subr.mxu0 0.0
        %1263 = vmatpush1.msra.mxu0 0.0
        %1264 = vmatprep.subr.mxu0 0.0
        %1265 = vmatpush1.msra.mxu0 0.0
        %1266 = vmatprep.subr.mxu0 0.0
        %1267 = vmatpush1.msra.mxu0 0.0
        %1268 = vmatprep.subr.mxu0 0.0
        %1269 = vmatpush1.msra.mxu0 0.0
        %1270 = vmatprep.mubr.f32.mxu0 0.0
        %1271 = vmatmul.mubr.f32.gmra.mrb[0].mxu0 %v1204
        %v1272 = vpop.f32.mrb[0].mxu0
        %v1273 = vadd.f32 0.0, %v1272
        %v1274 = vpop.f32.mrb[0].mxu0
        %v1275 = vadd.f32 0.0, %v1274
        %1276 = vdwg.mxu0
        %v1277 = vadd.f32 %v1275, %v302
        %v1278 = vtanh.pop %v1277
        %v1280 = vrot.slane %v1273, 4
        %v1282 = vadd.f32 %v1006, %v1280
        %1283 = vmatprep.subr.mxu0 0.0
        %1284 = vmatpush1.msra.mxu0 %v1115
        %1285 = vmatprep.subr.mxu0 0.0
        %1286 = vmatpush1.msra.mxu0 %v1116
        %1287 = vmatprep.subr.mxu0 0.0
        %1288 = vmatpush1.msra.mxu0 %v1117
        %1289 = vmatprep.subr.mxu0 0.0
        %1290 = vmatpush1.msra.mxu0 %v1118
        %1291 = vmatprep.subr.mxu0 0.0
        %1292 = vmatpush1.msra.mxu0 %v1119
        %1293 = vmatprep.subr.mxu0 0.0
        %1294 = vmatpush1.msra.mxu0 %v1120
        %1295 = vmatprep.subr.mxu0 0.0
        %1296 = vmatpush1.msra.mxu0 %v1121
        %1297 = vmatprep.subr.mxu0 0.0
        %1298 = vmatpush1.msra.mxu0 %v1122
        %1299 = vmatprep.subr.mxu0 0.0
        %1300 = vmatpush1.msra.mxu0 %v1123
        %1301 = vmatprep.subr.mxu0 0.0
        %1302 = vmatpush1.msra.mxu0 %v1124
        %1303 = vmatprep.subr.mxu0 0.0
        %1304 = vmatpush1.msra.mxu0 %v1125
        %1305 = vmatprep.subr.mxu0 0.0
        %1306 = vmatpush1.msra.mxu0 %v1126
        %1307 = vmatprep.subr.mxu0 0.0
        %1308 = vmatpush1.msra.mxu0 %v1127
        %1309 = vmatprep.subr.mxu0 0.0
        %1310 = vmatpush1.msra.mxu0 %v1128
        %1311 = vmatprep.subr.mxu0 0.0
        %1312 = vmatpush1.msra.mxu0 %v1129
        %1313 = vmatprep.subr.mxu0 0.0
        %1314 = vmatpush1.msra.mxu0 %v1130
        %1315 = vmatprep.subr.mxu0 0.0
        %1316 = vmatpush1.msra.mxu0 0.0
        %1317 = vmatprep.subr.mxu0 0.0
        %1318 = vmatpush1.msra.mxu0 0.0
        %1319 = vmatprep.subr.mxu0 0.0
        %1320 = vmatpush1.msra.mxu0 0.0
        %1321 = vmatprep.subr.mxu0 0.0
        %1322 = vmatpush1.msra.mxu0 0.0
        %1323 = vmatprep.subr.mxu0 0.0
        %1324 = vmatpush1.msra.mxu0 0.0
        %1325 = vmatprep.subr.mxu0 0.0
        %1326 = vmatpush1.msra.mxu0 0.0
        %1327 = vmatprep.subr.mxu0 0.0
        %1328 = vmatpush1.msra.mxu0 0.0
        %1329 = vmatprep.subr.mxu0 0.0
        %1330 = vmatpush1.msra.mxu0 0.0
        %1331 = vmatprep.subr.mxu0 0.0
        %1332 = vmatpush1.msra.mxu0 0.0
        %1333 = vmatprep.subr.mxu0 0.0
        %1334 = vmatpush1.msra.mxu0 0.0
        %1335 = vmatprep.subr.mxu0 0.0
        %1336 = vmatpush1.msra.mxu0 0.0
        %1337 = vmatprep.subr.mxu0 0.0
        %1338 = vmatpush1.msra.mxu0 0.0
        %1339 = vmatprep.subr.mxu0 0.0
        %1340 = vmatpush1.msra.mxu0 0.0
        %1341 = vmatprep.subr.mxu0 0.0
        %1342 = vmatpush1.msra.mxu0 0.0
        %1343 = vmatprep.subr.mxu0 0.0
        %1344 = vmatpush1.msra.mxu0 0.0
        %1345 = vmatprep.subr.mxu0 0.0
        %1346 = vmatpush1.msra.mxu0 0.0
        %1347 = vmatprep.mubr.f32.mxu0 0.0
        %1348 = vmatmul.mubr.f32.gmra.mrb[0].mxu0 %v1278
        %v1349 = vpop.f32.mrb[0].mxu0
        %v1350 = vadd.f32 0.0, %v1349
        %v1351 = vpop.f32.mrb[0].mxu0
        %1352 = vdwg.mxu0
        %v1354 = vrot.slane %v1350, 4
        %v1356 = vadd.f32 %v1282, %v1354
        %v1357 = vadd.f32 %v1356, %v295
        %1358 = vst [vmem:[%s282 + $0x18] sm:$0xf] %v1202
        %1359 = vst [vmem:[%s282 + $0x18] sm:$0xf0] %v1357
        %s1360 = sadd.s32 %s28, 1
        %p1361 = scmp.lt.s32.totalorder %s1360, 2
        // Predicated region
        $region57: #{tpu_custom_call.1} parent=39 // pred_check
          %p1362 = pneg %p1361
        $region58: #{tpu_custom_call.1} parent=39 // pred_check_branch
          %1364 = sbr.rel (%p1362) target = $region60
        $region59: #{tpu_custom_call.1} parent=39 // pred_region
          %v1365 = vld [vmem:[#allocation6] sm:$0xff]
          %v1366 = vld [vmem:[#allocation6 + $0x8] sm:$0xff]
          %v1367 = vld [vmem:[#allocation6 + $0x10] sm:$0xff]
          %v1368 = vld [vmem:[#allocation6 + $0x18] sm:$0xff]
          %v1369 = vld [vmem:[#allocation6 + $0x20] sm:$0xff]
          %v1370 = vld [vmem:[#allocation6 + $0x28] sm:$0xff]
          %v1371 = vld [vmem:[#allocation6 + $0x30] sm:$0xff]
          %v1372 = vld [vmem:[#allocation6 + $0x38] sm:$0xff]
          %v1373 = vld [vmem:[#allocation6 + $0x40] sm:$0xff]
          %v1374 = vld [vmem:[#allocation6 + $0x48] sm:$0xff]
          %v1375 = vld [vmem:[#allocation6 + $0x50] sm:$0xff]
          %v1376 = vld [vmem:[#allocation6 + $0x58] sm:$0xff]
          %v1377 = vld [vmem:[#allocation6 + $0x60] sm:$0xff]
          %v1378 = vld [vmem:[#allocation6 + $0x68] sm:$0xff]
          %v1379 = vld [vmem:[#allocation6 + $0x70] sm:$0xff]
          %v1380 = vld [vmem:[#allocation6 + $0x78] sm:$0xff]
          %v1381 = vld [vmem:[#allocation6 + $0x80] sm:$0xff]
          %v1382 = vld [vmem:[#allocation6 + $0x88] sm:$0xff]
          %v1383 = vld [vmem:[#allocation6 + $0x90] sm:$0xff]
          %v1384 = vld [vmem:[#allocation6 + $0x98] sm:$0xff]
          %v1385 = vld [vmem:[#allocation6 + $0xa0] sm:$0xff]
          %v1386 = vld [vmem:[#allocation6 + $0xa8] sm:$0xff]
          %v1387 = vld [vmem:[#allocation6 + $0xb0] sm:$0xff]
          %v1388 = vld [vmem:[#allocation6 + $0xb8] sm:$0xff]
          %v1389 = vld [vmem:[#allocation6 + $0xc0] sm:$0xff]
          %v1390 = vld [vmem:[#allocation6 + $0xc8] sm:$0xff]
          %v1391 = vld [vmem:[#allocation6 + $0xd0] sm:$0xff]
          %v1392 = vld [vmem:[#allocation6 + $0xd8] sm:$0xff]
          %v1393 = vld [vmem:[#allocation6 + $0xe0] sm:$0xff]
          %v1394 = vld [vmem:[#allocation6 + $0xe8] sm:$0xff]
          %v1395 = vld [vmem:[#allocation6 + $0xf0] sm:$0xff]
          %v1396 = vld [vmem:[#allocation6 + $0xf8] sm:$0xff]
          %1397 = vmatprep.subr.mxu0 %v1366
          %1398 = vmatpush1.msra.mxu0 %v1365
          %1399 = vmatprep.subr.mxu0 %v1368
          %1400 = vmatpush1.msra.mxu0 %v1367
          %1401 = vmatprep.subr.mxu0 %v1370
          %1402 = vmatpush1.msra.mxu0 %v1369
          %1403 = vmatprep.subr.mxu0 %v1372
          %1404 = vmatpush1.msra.mxu0 %v1371
          %1405 = vmatprep.subr.mxu0 %v1374
          %1406 = vmatpush1.msra.mxu0 %v1373
          %1407 = vmatprep.subr.mxu0 %v1376
          %1408 = vmatpush1.msra.mxu0 %v1375
          %1409 = vmatprep.subr.mxu0 %v1378
          %1410 = vmatpush1.msra.mxu0 %v1377
          %1411 = vmatprep.subr.mxu0 %v1380
          %1412 = vmatpush1.msra.mxu0 %v1379
          %1413 = vmatprep.subr.mxu0 %v1382
          %1414 = vmatpush1.msra.mxu0 %v1381
          %1415 = vmatprep.subr.mxu0 %v1384
          %1416 = vmatpush1.msra.mxu0 %v1383
          %1417 = vmatprep.subr.mxu0 %v1386
          %1418 = vmatpush1.msra.mxu0 %v1385
          %1419 = vmatprep.subr.mxu0 %v1388
          %1420 = vmatpush1.msra.mxu0 %v1387
          %1421 = vmatprep.subr.mxu0 %v1390
          %1422 = vmatpush1.msra.mxu0 %v1389
          %1423 = vmatprep.subr.mxu0 %v1392
          %1424 = vmatpush1.msra.mxu0 %v1391
          %1425 = vmatprep.subr.mxu0 %v1394
          %1426 = vmatpush1.msra.mxu0 %v1393
          %1427 = vmatprep.subr.mxu0 %v1396
          %1428 = vmatpush1.msra.mxu0 %v1395
          %1429 = vmatprep.subr.mxu0 0.0
          %1430 = vmatpush1.msra.mxu0 0.0
          %1431 = vmatprep.subr.mxu0 0.0
          %1432 = vmatpush1.msra.mxu0 0.0
          %1433 = vmatprep.subr.mxu0 0.0
          %1434 = vmatpush1.msra.mxu0 0.0
          %1435 = vmatprep.subr.mxu0 0.0
          %1436 = vmatpush1.msra.mxu0 0.0
          %1437 = vmatprep.subr.mxu0 0.0
          %1438 = vmatpush1.msra.mxu0 0.0
          %1439 = vmatprep.subr.mxu0 0.0
          %1440 = vmatpush1.msra.mxu0 0.0
          %1441 = vmatprep.subr.mxu0 0.0
          %1442 = vmatpush1.msra.mxu0 0.0
          %1443 = vmatprep.subr.mxu0 0.0
          %1444 = vmatpush1.msra.mxu0 0.0
          %1445 = vmatprep.subr.mxu0 0.0
          %1446 = vmatpush1.msra.mxu0 0.0
          %1447 = vmatprep.subr.mxu0 0.0
          %1448 = vmatpush1.msra.mxu0 0.0
          %1449 = vmatprep.subr.mxu0 0.0
          %1450 = vmatpush1.msra.mxu0 0.0
          %1451 = vmatprep.subr.mxu0 0.0
          %1452 = vmatpush1.msra.mxu0 0.0
          %1453 = vmatprep.subr.mxu0 0.0
          %1454 = vmatpush1.msra.mxu0 0.0
          %1455 = vmatprep.subr.mxu0 0.0
          %1456 = vmatpush1.msra.mxu0 0.0
          %1457 = vmatprep.subr.mxu0 0.0
          %1458 = vmatpush1.msra.mxu0 0.0
          %1459 = vmatprep.subr.mxu0 0.0
          %1460 = vmatpush1.msra.mxu0 0.0
          %1461 = vmatprep.mubr.f32.mxu0 0.0
          %1462 = vmatmul.mubr.f32.gmra.mrb[0].mxu0 %v1202
          %v1463 = vpop.f32.mrb[0].mxu0
          %v1464 = vadd.f32 0.0, %v1463
          %v1465 = vpop.f32.mrb[0].mxu0
          %v1466 = vadd.f32 0.0, %v1465
          %1467 = vdwg.mxu0
          %v1468 = vadd.f32 %v1466, %v302
          %v1469 = vtanh.pop %v1468
          %v1470 = vadd.f32 %v1202, %v1464
          %v1471 = vld [vmem:[#allocation8] sm:$0xff]
          %v1472 = vld [vmem:[#allocation8 + $0x8] sm:$0xff]
          %v1473 = vld [vmem:[#allocation8 + $0x10] sm:$0xff]
          %v1474 = vld [vmem:[#allocation8 + $0x18] sm:$0xff]
          %v1475 = vld [vmem:[#allocation8 + $0x20] sm:$0xff]
          %v1476 = vld [vmem:[#allocation8 + $0x28] sm:$0xff]
          %v1477 = vld [vmem:[#allocation8 + $0x30] sm:$0xff]
          %v1478 = vld [vmem:[#allocation8 + $0x38] sm:$0xff]
          %v1479 = vld [vmem:[#allocation8 + $0x40] sm:$0xff]
          %v1480 = vld [vmem:[#allocation8 + $0x48] sm:$0xff]
          %v1481 = vld [vmem:[#allocation8 + $0x50] sm:$0xff]
          %v1482 = vld [vmem:[#allocation8 + $0x58] sm:$0xff]
          %v1483 = vld [vmem:[#allocation8 + $0x60] sm:$0xff]
          %v1484 = vld [vmem:[#allocation8 + $0x68] sm:$0xff]
          %v1485 = vld [vmem:[#allocation8 + $0x70] sm:$0xff]
          %v1486 = vld [vmem:[#allocation8 + $0x78] sm:$0xff]
          %1487 = vmatprep.subr.mxu0 0.0
          %1488 = vmatpush1.msra.mxu0 %v1471
          %1489 = vmatprep.subr.mxu0 0.0
          %1490 = vmatpush1.msra.mxu0 %v1472
          %1491 = vmatprep.subr.mxu0 0.0
          %1492 = vmatpush1.msra.mxu0 %v1473
          %1493 = vmatprep.subr.mxu0 0.0
          %1494 = vmatpush1.msra.mxu0 %v1474
          %1495 = vmatprep.subr.mxu0 0.0
          %1496 = vmatpush1.msra.mxu0 %v1475
          %1497 = vmatprep.subr.mxu0 0.0
          %1498 = vmatpush1.msra.mxu0 %v1476
          %1499 = vmatprep.subr.mxu0 0.0
          %1500 = vmatpush1.msra.mxu0 %v1477
          %1501 = vmatprep.subr.mxu0 0.0
          %1502 = vmatpush1.msra.mxu0 %v1478
          %1503 = vmatprep.subr.mxu0 0.0
          %1504 = vmatpush1.msra.mxu0 %v1479
          %1505 = vmatprep.subr.mxu0 0.0
          %1506 = vmatpush1.msra.mxu0 %v1480
          %1507 = vmatprep.subr.mxu0 0.0
          %1508 = vmatpush1.msra.mxu0 %v1481
          %1509 = vmatprep.subr.mxu0 0.0
          %1510 = vmatpush1.msra.mxu0 %v1482
          %1511 = vmatprep.subr.mxu0 0.0
          %1512 = vmatpush1.msra.mxu0 %v1483
          %1513 = vmatprep.subr.mxu0 0.0
          %1514 = vmatpush1.msra.mxu0 %v1484
          %1515 = vmatprep.subr.mxu0 0.0
          %1516 = vmatpush1.msra.mxu0 %v1485
          %1517 = vmatprep.subr.mxu0 0.0
          %1518 = vmatpush1.msra.mxu0 %v1486
          %1519 = vmatprep.subr.mxu0 0.0
          %1520 = vmatpush1.msra.mxu0 0.0
          %1521 = vmatprep.subr.mxu0 0.0
          %1522 = vmatpush1.msra.mxu0 0.0
          %1523 = vmatprep.subr.mxu0 0.0
          %1524 = vmatpush1.msra.mxu0 0.0
          %1525 = vmatprep.subr.mxu0 0.0
          %1526 = vmatpush1.msra.mxu0 0.0
          %1527 = vmatprep.subr.mxu0 0.0
          %1528 = vmatpush1.msra.mxu0 0.0
          %1529 = vmatprep.subr.mxu0 0.0
          %1530 = vmatpush1.msra.mxu0 0.0
          %1531 = vmatprep.subr.mxu0 0.0
          %1532 = vmatpush1.msra.mxu0 0.0
          %1533 = vmatprep.subr.mxu0 0.0
          %1534 = vmatpush1.msra.mxu0 0.0
          %1535 = vmatprep.subr.mxu0 0.0
          %1536 = vmatpush1.msra.mxu0 0.0
          %1537 = vmatprep.subr.mxu0 0.0
          %1538 = vmatpush1.msra.mxu0 0.0
          %1539 = vmatprep.subr.mxu0 0.0
          %1540 = vmatpush1.msra.mxu0 0.0
          %1541 = vmatprep.subr.mxu0 0.0
          %1542 = vmatpush1.msra.mxu0 0.0
          %1543 = vmatprep.subr.mxu0 0.0
          %1544 = vmatpush1.msra.mxu0 0.0
          %1545 = vmatprep.subr.mxu0 0.0
          %1546 = vmatpush1.msra.mxu0 0.0
          %1547 = vmatprep.subr.mxu0 0.0
          %1548 = vmatpush1.msra.mxu0 0.0
          %1549 = vmatprep.subr.mxu0 0.0
          %1550 = vmatpush1.msra.mxu0 0.0
          %1551 = vmatprep.mubr.f32.mxu0 0.0
          %1552 = vmatmul.mubr.f32.gmra.mrb[0].mxu0 %v1469
          %v1553 = vpop.f32.mrb[0].mxu0
          %v1554 = vadd.f32 0.0, %v1553
          %v1555 = vpop.f32.mrb[0].mxu0
          %1556 = vdwg.mxu0
          %v1557 = vadd.f32 %v1470, %v1554
          %v1558 = vadd.f32 %v1557, %v295
          %1559 = vst [vmem:[#allocation2] sm:$0xf] %v1558
          %v1560 = vld [vmem:[#allocation6] sm:$0xff]
          %v1561 = vld [vmem:[#allocation6 + $0x8] sm:$0xff]
          %v1562 = vld [vmem:[#allocation6 + $0x10] sm:$0xff]
          %v1563 = vld [vmem:[#allocation6 + $0x18] sm:$0xff]
          %v1564 = vld [vmem:[#allocation6 + $0x20] sm:$0xff]
          %v1565 = vld [vmem:[#allocation6 + $0x28] sm:$0xff]
          %v1566 = vld [vmem:[#allocation6 + $0x30] sm:$0xff]
          %v1567 = vld [vmem:[#allocation6 + $0x38] sm:$0xff]
          %v1568 = vld [vmem:[#allocation6 + $0x40] sm:$0xff]
          %v1569 = vld [vmem:[#allocation6 + $0x48] sm:$0xff]
          %v1570 = vld [vmem:[#allocation6 + $0x50] sm:$0xff]
          %v1571 = vld [vmem:[#allocation6 + $0x58] sm:$0xff]
          %v1572 = vld [vmem:[#allocation6 + $0x60] sm:$0xff]
          %v1573 = vld [vmem:[#allocation6 + $0x68] sm:$0xff]
          %v1574 = vld [vmem:[#allocation6 + $0x70] sm:$0xff]
          %v1575 = vld [vmem:[#allocation6 + $0x78] sm:$0xff]
          %v1576 = vld [vmem:[#allocation6 + $0x80] sm:$0xff]
          %v1577 = vld [vmem:[#allocation6 + $0x88] sm:$0xff]
          %v1578 = vld [vmem:[#allocation6 + $0x90] sm:$0xff]
          %v1579 = vld [vmem:[#allocation6 + $0x98] sm:$0xff]
          %v1580 = vld [vmem:[#allocation6 + $0xa0] sm:$0xff]
          %v1581 = vld [vmem:[#allocation6 + $0xa8] sm:$0xff]
          %v1582 = vld [vmem:[#allocation6 + $0xb0] sm:$0xff]
          %v1583 = vld [vmem:[#allocation6 + $0xb8] sm:$0xff]
          %v1584 = vld [vmem:[#allocation6 + $0xc0] sm:$0xff]
          %v1585 = vld [vmem:[#allocation6 + $0xc8] sm:$0xff]
          %v1586 = vld [vmem:[#allocation6 + $0xd0] sm:$0xff]
          %v1587 = vld [vmem:[#allocation6 + $0xd8] sm:$0xff]
          %v1588 = vld [vmem:[#allocation6 + $0xe0] sm:$0xff]
          %v1589 = vld [vmem:[#allocation6 + $0xe8] sm:$0xff]
          %v1590 = vld [vmem:[#allocation6 + $0xf0] sm:$0xff]
          %v1591 = vld [vmem:[#allocation6 + $0xf8] sm:$0xff]
          %v1593 = vrot.slane %v1357, 4
          %1595 = vmatprep.subr.mxu0 %v1561
          %1596 = vmatpush1.msra.mxu0 %v1560
          %1597 = vmatprep.subr.mxu0 %v1563
          %1598 = vmatpush1.msra.mxu0 %v1562
          %1599 = vmatprep.subr.mxu0 %v1565
          %1600 = vmatpush1.msra.mxu0 %v1564
          %1601 = vmatprep.subr.mxu0 %v1567
          %1602 = vmatpush1.msra.mxu0 %v1566
          %1603 = vmatprep.subr.mxu0 %v1569
          %1604 = vmatpush1.msra.mxu0 %v1568
          %1605 = vmatprep.subr.mxu0 %v1571
          %1606 = vmatpush1.msra.mxu0 %v1570
          %1607 = vmatprep.subr.mxu0 %v1573
          %1608 = vmatpush1.msra.mxu0 %v1572
          %1609 = vmatprep.subr.mxu0 %v1575
          %1610 = vmatpush1.msra.mxu0 %v1574
          %1611 = vmatprep.subr.mxu0 %v1577
          %1612 = vmatpush1.msra.mxu0 %v1576
          %1613 = vmatprep.subr.mxu0 %v1579
          %1614 = vmatpush1.msra.mxu0 %v1578
          %1615 = vmatprep.subr.mxu0 %v1581
          %1616 = vmatpush1.msra.mxu0 %v1580
          %1617 = vmatprep.subr.mxu0 %v1583
          %1618 = vmatpush1.msra.mxu0 %v1582
          %1619 = vmatprep.subr.mxu0 %v1585
          %1620 = vmatpush1.msra.mxu0 %v1584
          %1621 = vmatprep.subr.mxu0 %v1587
          %1622 = vmatpush1.msra.mxu0 %v1586
          %1623 = vmatprep.subr.mxu0 %v1589
          %1624 = vmatpush1.msra.mxu0 %v1588
          %1625 = vmatprep.subr.mxu0 %v1591
          %1626 = vmatpush1.msra.mxu0 %v1590
          %1627 = vmatprep.subr.mxu0 0.0
          %1628 = vmatpush1.msra.mxu0 0.0
          %1629 = vmatprep.subr.mxu0 0.0
          %1630 = vmatpush1.msra.mxu0 0.0
          %1631 = vmatprep.subr.mxu0 0.0
          %1632 = vmatpush1.msra.mxu0 0.0
          %1633 = vmatprep.subr.mxu0 0.0
          %1634 = vmatpush1.msra.mxu0 0.0
          %1635 = vmatprep.subr.mxu0 0.0
          %1636 = vmatpush1.msra.mxu0 0.0
          %1637 = vmatprep.subr.mxu0 0.0
          %1638 = vmatpush1.msra.mxu0 0.0
          %1639 = vmatprep.subr.mxu0 0.0
          %1640 = vmatpush1.msra.mxu0 0.0
          %1641 = vmatprep.subr.mxu0 0.0
          %1642 = vmatpush1.msra.mxu0 0.0
          %1643 = vmatprep.subr.mxu0 0.0
          %1644 = vmatpush1.msra.mxu0 0.0
          %1645 = vmatprep.subr.mxu0 0.0
          %1646 = vmatpush1.msra.mxu0 0.0
          %1647 = vmatprep.subr.mxu0 0.0
          %1648 = vmatpush1.msra.mxu0 0.0
          %1649 = vmatprep.subr.mxu0 0.0
          %1650 = vmatpush1.msra.mxu0 0.0
          %1651 = vmatprep.subr.mxu0 0.0
          %1652 = vmatpush1.msra.mxu0 0.0
          %1653 = vmatprep.subr.mxu0 0.0
          %1654 = vmatpush1.msra.mxu0 0.0
          %1655 = vmatprep.subr.mxu0 0.0
          %1656 = vmatpush1.msra.mxu0 0.0
          %1657 = vmatprep.subr.mxu0 0.0
          %1658 = vmatpush1.msra.mxu0 0.0
          %1659 = vmatprep.mubr.f32.mxu0 0.0
          %1660 = vmatmul.mubr.f32.gmra.mrb[0].mxu0 %v1593
          %v1661 = vpop.f32.mrb[0].mxu0
          %v1662 = vadd.f32 0.0, %v1661
          %v1663 = vpop.f32.mrb[0].mxu0
          %v1664 = vadd.f32 0.0, %v1663
          %1665 = vdwg.mxu0
          %v1666 = vadd.f32 %v1664, %v302
          %v1667 = vtanh.pop %v1666
          %v1669 = vrot.slane %v1662, 4
          %v1671 = vadd.f32 %v1357, %v1669
          %v1672 = vld [vmem:[#allocation8] sm:$0xff]
          %v1673 = vld [vmem:[#allocation8 + $0x8] sm:$0xff]
          %v1674 = vld [vmem:[#allocation8 + $0x10] sm:$0xff]
          %v1675 = vld [vmem:[#allocation8 + $0x18] sm:$0xff]
          %v1676 = vld [vmem:[#allocation8 + $0x20] sm:$0xff]
          %v1677 = vld [vmem:[#allocation8 + $0x28] sm:$0xff]
          %v1678 = vld [vmem:[#allocation8 + $0x30] sm:$0xff]
          %v1679 = vld [vmem:[#allocation8 + $0x38] sm:$0xff]
          %v1680 = vld [vmem:[#allocation8 + $0x40] sm:$0xff]
          %v1681 = vld [vmem:[#allocation8 + $0x48] sm:$0xff]
          %v1682 = vld [vmem:[#allocation8 + $0x50] sm:$0xff]
          %v1683 = vld [vmem:[#allocation8 + $0x58] sm:$0xff]
          %v1684 = vld [vmem:[#allocation8 + $0x60] sm:$0xff]
          %v1685 = vld [vmem:[#allocation8 + $0x68] sm:$0xff]
          %v1686 = vld [vmem:[#allocation8 + $0x70] sm:$0xff]
          %v1687 = vld [vmem:[#allocation8 + $0x78] sm:$0xff]
          %1688 = vmatprep.subr.mxu0 0.0
          %1689 = vmatpush1.msra.mxu0 %v1672
          %1690 = vmatprep.subr.mxu0 0.0
          %1691 = vmatpush1.msra.mxu0 %v1673
          %1692 = vmatprep.subr.mxu0 0.0
          %1693 = vmatpush1.msra.mxu0 %v1674
          %1694 = vmatprep.subr.mxu0 0.0
          %1695 = vmatpush1.msra.mxu0 %v1675
          %1696 = vmatprep.subr.mxu0 0.0
          %1697 = vmatpush1.msra.mxu0 %v1676
          %1698 = vmatprep.subr.mxu0 0.0
          %1699 = vmatpush1.msra.mxu0 %v1677
          %1700 = vmatprep.subr.mxu0 0.0
          %1701 = vmatpush1.msra.mxu0 %v1678
          %1702 = vmatprep.subr.mxu0 0.0
          %1703 = vmatpush1.msra.mxu0 %v1679
          %1704 = vmatprep.subr.mxu0 0.0
          %1705 = vmatpush1.msra.mxu0 %v1680
          %1706 = vmatprep.subr.mxu0 0.0
          %1707 = vmatpush1.msra.mxu0 %v1681
          %1708 = vmatprep.subr.mxu0 0.0
          %1709 = vmatpush1.msra.mxu0 %v1682
          %1710 = vmatprep.subr.mxu0 0.0
          %1711 = vmatpush1.msra.mxu0 %v1683
          %1712 = vmatprep.subr.mxu0 0.0
          %1713 = vmatpush1.msra.mxu0 %v1684
          %1714 = vmatprep.subr.mxu0 0.0
          %1715 = vmatpush1.msra.mxu0 %v1685
          %1716 = vmatprep.subr.mxu0 0.0
          %1717 = vmatpush1.msra.mxu0 %v1686
          %1718 = vmatprep.subr.mxu0 0.0
          %1719 = vmatpush1.msra.mxu0 %v1687
          %1720 = vmatprep.subr.mxu0 0.0
          %1721 = vmatpush1.msra.mxu0 0.0
          %1722 = vmatprep.subr.mxu0 0.0
          %1723 = vmatpush1.msra.mxu0 0.0
          %1724 = vmatprep.subr.mxu0 0.0
          %1725 = vmatpush1.msra.mxu0 0.0
          %1726 = vmatprep.subr.mxu0 0.0
          %1727 = vmatpush1.msra.mxu0 0.0
          %1728 = vmatprep.subr.mxu0 0.0
          %1729 = vmatpush1.msra.mxu0 0.0
          %1730 = vmatprep.subr.mxu0 0.0
          %1731 = vmatpush1.msra.mxu0 0.0
          %1732 = vmatprep.subr.mxu0 0.0
          %1733 = vmatpush1.msra.mxu0 0.0
          %1734 = vmatprep.subr.mxu0 0.0
          %1735 = vmatpush1.msra.mxu0 0.0
          %1736 = vmatprep.subr.mxu0 0.0
          %1737 = vmatpush1.msra.mxu0 0.0
          %1738 = vmatprep.subr.mxu0 0.0
          %1739 = vmatpush1.msra.mxu0 0.0
          %1740 = vmatprep.subr.mxu0 0.0
          %1741 = vmatpush1.msra.mxu0 0.0
          %1742 = vmatprep.subr.mxu0 0.0
          %1743 = vmatpush1.msra.mxu0 0.0
          %1744 = vmatprep.subr.mxu0 0.0
          %1745 = vmatpush1.msra.mxu0 0.0
          %1746 = vmatprep.subr.mxu0 0.0
          %1747 = vmatpush1.msra.mxu0 0.0
          %1748 = vmatprep.subr.mxu0 0.0
          %1749 = vmatpush1.msra.mxu0 0.0
          %1750 = vmatprep.subr.mxu0 0.0
          %1751 = vmatpush1.msra.mxu0 0.0
          %1752 = vmatprep.mubr.f32.mxu0 0.0
          %1753 = vmatmul.mubr.f32.gmra.mrb[0].mxu0 %v1667
          %v1754 = vpop.f32.mrb[0].mxu0
          %v1755 = vadd.f32 0.0, %v1754
          %v1756 = vpop.f32.mrb[0].mxu0
          %1757 = vdwg.mxu0
          %v1759 = vrot.slane %v1755, 4
          %v1761 = vadd.f32 %v1671, %v1759
          %v1762 = vadd.f32 %v1761, %v295
          %1763 = vst [vmem:[#allocation2] sm:$0xf0] %v1762
        $region60: #{tpu_custom_call.1} parent=39 // pred_fallthru
          _
        %s1764 = sand.u32 %s155, 1
        %s1765 = scalar_lea.sflag [#allocation5], %s1764
        %s1766 = sand.u32 %s155, 1
        %s1767 = smul.addr %s1766, 32
        %s1768 = scalar_lea.vmem [#allocation9], %s1767
        // Predicated region
        $region61: #{tpu_custom_call.1} parent=39 // pred_check
          %p1769 = pneg %p165
        $region62: #{tpu_custom_call.1} parent=39 // pred_check_branch
          %1771 = sbr.rel (%p1769) target = $region64
        $region63: #{tpu_custom_call.1} parent=39 // pred_region
          %s1772 = smul.u32 4, %s28
          %s1774 = ssub.s32 512, 512
          %1775 = vsyncadd %s1765, %s1774
          %s1776 = smul.addr %s27, 8
          %s1777 = sadd.s32 %s1772, %s1776
          %s1778 = smul.addr %s1777, 128
          %s1779 = scalar_lea.hbm %s5, %s1778
          %s1781 = sshll.u32 %s1768, 4
          %s1782 = int_to_ptr.vmem [resolvable:$true] %s1781
          %1784 = dma.vmem_to_hbm [thread:$0]  %s1782, 512, %s1779, %s1765
        $region64: #{tpu_custom_call.1} parent=39 // pred_fallthru
          _
      $region40: #{tpu_custom_call.1} parent=5 // pred_fallthru
        _
      %p1785 = scmp.le.s32.totalorder 2, %s18
      // Predicated region
      $region65: #{tpu_custom_call.1} parent=5 // pred_check
        %p1786 = pneg %p1785
      $region66: #{tpu_custom_call.1} parent=5 // pred_check_branch
        %1788 = sbr.rel (%p1786) target = $region68
      $region67: #{tpu_custom_call.1} parent=5 // pred_region
        %s1789 = ssub.s32 %s18, 2
        // Predicated region
        $region69: #{tpu_custom_call.1} parent=67 // pred_check
          %p1790 = pneg %p171
        $region70: #{tpu_custom_call.1} parent=67 // pred_check_branch
          %1792 = sbr.rel (%p1790) target = $region72
        $region71: #{tpu_custom_call.1} parent=67 // pred_region
          %s1793 = sand.u32 %s156, 1
          %s1794 = scalar_lea.sflag [#allocation5], %s1793
          %s1795 = sand.u32 %s156, 1
          %s1796 = smul.addr %s1795, 32
          %s1797 = scalar_lea.vmem [#allocation9], %s1796
          %1798 = dma.done %s1794, 512
        $region72: #{tpu_custom_call.1} parent=67 // pred_fallthru
          _
      $region68: #{tpu_custom_call.1} parent=5 // pred_fallthru
        _
    $region6: #{tpu_custom_call.1} parent=1 // loop_footer
      %s22 = sadd.s32 1, %s18
    $region7: #{tpu_custom_call.1} parent=1 // loop_footer_branch
      %17 = sbr.rel target = $region3
    $region8: #{tpu_custom_call.1} parent=1 // loop_exit
      _
    %1799 = vsyncpa [#allocation4], 1
    %s1800 = scalar_lea.sflag [#allocation4], 1
    %1801 = vsyncpa %s1800, 1
    %1802 = vsyncpa [#allocation7], 1
    %1803 = vsyncpa [#allocation5], 1
    %s1804 = scalar_lea.sflag [#allocation5], 1
    %1805 = vsyncpa %s1804, 1

</llo_original>
